<compile_context>
chip_gen: v6e
topology: v6e:2x2x1
jax: 0.10.0
libtpu: 0.0.40
codegen_flags: <defaults>
</compile_context>

<pallas_src>
import functools

import jax
import jax.numpy as jnp
from jax import lax
from jax.experimental import pallas as pl
from jax.experimental.pallas import tpu as pltpu

EPS = 1e-5
NEG_SLOPE = 0.2


def _resblock_kernel(x_ref, w1_ref, s1_ref, t1_ref, w2_ref, s2_ref, t2_ref,
                     o_ref, xpad_ref, hpad_ref, *, H, W):
    """Fused conv3x3+BN+LReLU -> conv3x3+BN+LReLU -> +residual for one image.

    Layout: channels on the sublane axis, flattened spatial (S = H*W) on the lane axis.

    x_ref:    (C, S)    dense image
    w*_ref:   (9, C, C) conv taps; tap k = 3*(kh+1) + (kw+1), each (Cout, Cin)
    s*/t*:    (C, 1)    folded BatchNorm scale / shift (f32)
    o_ref:    (C, S)    dense output (lane-dense store)
    xpad_ref: (C, Sp)   VMEM scratch: zero halo (W+1) | image | zero halo (W+1)
    hpad_ref: (C, Sp)   VMEM scratch for the zero-haloed intermediate activation
    """
    C = x_ref.shape[0]
    S = H * W
    I0 = W + 1  # interior offset inside the padded scratches

    # Valid-column masks, built in-kernel (no HBM mask stream, no VMEM mask buffer).
    # In the flattened layout a +/-1 lane shift wraps to the adjacent image row, so the
    # first / last column must be masked for the kw = -1 / kw = +1 tap groups.
    col = lax.broadcasted_iota(jnp.int32, (1, S), 1) % W
    not_left = jnp.where(col != 0, 1.0, 0.0).astype(jnp.float32)        # kw = -1 taps
    not_right = jnp.where(col != W - 1, 1.0, 0.0).astype(jnp.float32)   # kw = +1 taps

    # Zero only the halos (the interiors are fully overwritten every step).  Re-zeroed on
    # every step because with "parallel" grid semantics each TensorCore owns its own
    # scratch and only one of them ever sees program_id == 0.
    halo = jnp.zeros((C, I0), xpad_ref.dtype)
    xpad_ref[:, pl.ds(0, I0)] = halo
    xpad_ref[:, pl.ds(I0 + S, I0)] = halo
    hpad_ref[:, pl.ds(0, I0)] = halo
    hpad_ref[:, pl.ds(I0 + S, I0)] = halo

    x = x_ref[...]                      # single HBM read of x (also used for the residual)
    xpad_ref[:, pl.ds(I0, S)] = x

    def conv_bn_lrelu(src_ref, w_ref, s_ref, t_ref):
        # Nine taps as static lane-offset slices of the padded scratch; channel mixing is a
        # small (C, C) x (C, S) matmul per tap (f32 accumulation).
        # TODO(synk): for C >= ~64, pack the 9 taps along sublanes into one (9*C, S) operand
        #             and issue a single deeper-K matmul instead of 9 shallow MXU passes.
        groups = []
        for kw in (-1, 0, 1):
            acc = jnp.zeros((C, S), jnp.float32)
            for kh in (-1, 0, 1):
                k = (kh + 1) * 3 + (kw + 1)
                tap = src_ref[:, pl.ds(I0 + kh * W + kw, S)]
                acc = acc + jnp.dot(w_ref[k], tap, preferred_element_type=jnp.float32)
            groups.append(acc)
        y = groups[1] + not_left * groups[0] + not_right * groups[2]
        y = y * s_ref[...] + t_ref[...]              # folded eval-mode BatchNorm
        return jnp.where(y >= 0, y, NEG_SLOPE * y)   # LeakyReLU(0.2)

    # ---- stage 1: conv1 -> bn1 -> lrelu (intermediate never touches HBM) ----
    h = conv_bn_lrelu(xpad_ref, w1_ref, s1_ref, t1_ref)
    hpad_ref[:, pl.ds(I0, S)] = h.astype(hpad_ref.dtype)

    # ---- stage 2: conv2 -> bn2 -> lrelu -> + residual ----
    y = conv_bn_lrelu(hpad_ref, w2_ref, s2_ref, t2_ref)
    y = y + x.astype(jnp.float32)                    # residual re-used from VMEM
    o_ref[...] = y.astype(o_ref.dtype)


def _padded_tile_bytes(shape, dtype):
    """VMEM footprint of a buffer including (sublane, 128-lane) tile padding."""
    b = jnp.dtype(dtype).itemsize
    sub = 8 * max(1, 4 // b)            # f32: 8, bf16: 16, int8: 32 sublanes per tile
    lead = 1
    for d in shape[:-2]:
        lead *= int(d)
    rows = -(-int(shape[-2]) // sub) * sub
    cols = -(-int(shape[-1]) // 128) * 128
    return lead * rows * cols * b


def _vmem_limit_bytes():
    """Generation-aware scoped-VMEM budget (~3/4 of capacity).

    v5e/v6e: 128 MiB -> 96 MiB; v7x: 64 MiB -> 48 MiB.  Falls back to the most
    conservative (v7x) figure if the hardware query is unavailable.
    """
    try:
        cap = int(pltpu.get_tpu_info().vmem_capacity_bytes)
    except Exception:
        cap = 64 * 1024 * 1024
    return min((cap * 3) // 4, 112 * 1024 * 1024)


def resblock_forward(x_nchw, p):
    """out = lrelu(bn2(conv2(lrelu(bn1(conv1(x)))))) + x, NCHW in / NCHW out, one pallas_call.

    Streams activations/weights in x_nchw.dtype: feed bf16 activations for the HBM-bound
    bandwidth win inside a bf16 model; f32 input keeps exact f32 module semantics.
    """
    N, C, H, W = x_nchw.shape
    Cout, Cin = p["w1"].shape[0], p["w1"].shape[1]
    assert Cin == C and Cout == C, "ResBlock residual add requires in_channels == out_channels"
    S = H * W
    I0 = W + 1
    Sp = S + 2 * I0
    sdt = x_nchw.dtype

    # Free reshape (merging contiguous trailing dims): NCHW -> (N, C, H*W).
    x_flat = x_nchw.reshape(N, C, S)

    def fold_bn(g, b, m, v):
        inv = g / jnp.sqrt(v + EPS)
        return (inv.reshape(C, 1).astype(jnp.float32),
                (b - m * inv).reshape(C, 1).astype(jnp.float32))

    s1, t1 = fold_bn(p["g1"], p["b1"], p["m1"], p["v1"])
    s2, t2 = fold_bn(p["g2"], p["b2"], p["m2"], p["v2"])
    # OIHW -> (tap, Cout, Cin), tap k = 3*(kh+1) + (kw+1). Tiny arrays; negligible cost.
    w1 = jnp.transpose(p["w1"], (2, 3, 0, 1)).reshape(9, C, C).astype(sdt)
    w2 = jnp.transpose(p["w2"], (2, 3, 0, 1)).reshape(9, C, C).astype(sdt)

    # Per-step VMEM footprint (with (8,128) tile padding) vs the generation-aware budget.
    vmem_limit = _vmem_limit_bytes()
    vmem_est = (
        2 * _padded_tile_bytes((C, S), sdt)                  # input block (double-buffered)
        + 2 * _padded_tile_bytes((C, S), sdt)                # output block (double-buffered)
        + 2 * 2 * _padded_tile_bytes((9, C, C), sdt)         # both weight stacks
        + 4 * 2 * _padded_tile_bytes((C, 1), jnp.float32)    # BN scale / shift
        + 2 * _padded_tile_bytes((C, Sp), sdt)               # xpad + hpad scratches
        + 8 * _padded_tile_bytes((C, S), jnp.float32)        # f32 accumulators / headroom
    )
    assert vmem_est <= vmem_limit, (
        f"whole-image-per-step tiling needs ~{vmem_est} B VMEM > budget {vmem_limit} B")
    # TODO(synk): for images that overflow VMEM (and for N < num cores on v7x), add a
    #             row-tile grid axis with a 2-row halo instead of whole-image tiles.

    kernel = functools.partial(_resblock_kernel, H=H, W=W)
    out_flat = pl.pallas_call(
        kernel,
        out_shape=jax.ShapeDtypeStruct((N, C, S), sdt),
        grid_spec=pltpu.PrefetchScalarGridSpec(
            num_scalar_prefetch=0,
            grid=(N,),
            in_specs=[
                pl.BlockSpec((None, C, S), lambda n: (n, 0, 0)),   # dense image (C, H*W)
                pl.BlockSpec((9, C, C), lambda n: (0, 0, 0)),      # conv1 taps
                pl.BlockSpec((C, 1), lambda n: (0, 0)),            # bn1 scale
                pl.BlockSpec((C, 1), lambda n: (0, 0)),            # bn1 shift
                pl.BlockSpec((9, C, C), lambda n: (0, 0, 0)),      # conv2 taps
                pl.BlockSpec((C, 1), lambda n: (0, 0)),            # bn2 scale
                pl.BlockSpec((C, 1), lambda n: (0, 0)),            # bn2 shift
            ],
            out_specs=pl.BlockSpec((None, C, S), lambda n: (n, 0, 0)),
            scratch_shapes=[pltpu.VMEM((C, Sp), sdt),              # zero-haloed input
                            pltpu.VMEM((C, Sp), sdt)],             # zero-haloed intermediate
        ),
        compiler_params=pltpu.CompilerParams(
            dimension_semantics=("parallel",),   # batch grid shards across v7x's 2 TCs
            vmem_limit_bytes=vmem_limit,
        ),
    )(x_flat, w1, s1, t1, w2, s2, t2)

    # Free reshape back to NCHW (no post-kernel pad/slice/transpose).
    return out_flat.reshape(N, C, H, W)


def resblock_reference(x_nchw, p):
    """Pure-JAX reference (eval-mode BatchNorm) for correctness checking."""
    def conv_bn_lrelu(x, w, g, b, m, v):
        y = jax.lax.conv_general_dilated(
            x, w, window_strides=(1, 1), padding=((1, 1), (1, 1)),
            dimension_numbers=("NCHW", "OIHW", "NCHW"),
            precision=jax.lax.Precision.HIGHEST)
        inv = g / jnp.sqrt(v + EPS)
        y = y * inv[None, :, None, None] + (b - m * inv)[None, :, None, None]
        return jnp.where(y >= 0, y, NEG_SLOPE * y)
    h = conv_bn_lrelu(x_nchw, p["w1"], p["g1"], p["b1"], p["m1"], p["v1"])
    y = conv_bn_lrelu(h, p["w2"], p["g2"], p["b2"], p["m2"], p["v2"])
    return y + x_nchw


def make_params(key, in_channels, out_channels):
    ks = jax.random.split(key, 10)
    f32 = jnp.float32
    return {
        "w1": 0.1 * jax.random.normal(ks[0], (out_channels, in_channels, 3, 3), f32),
        "g1": 1.0 + 0.1 * jax.random.normal(ks[1], (out_channels,), f32),
        "b1": 0.1 * jax.random.normal(ks[2], (out_channels,), f32),
        "m1": 0.1 * jax.random.normal(ks[3], (out_channels,), f32),
        "v1": 0.5 + jax.random.uniform(ks[4], (out_channels,), f32),
        "w2": 0.1 * jax.random.normal(ks[5], (out_channels, out_channels, 3, 3), f32),
        "g2": 1.0 + 0.1 * jax.random.normal(ks[6], (out_channels,), f32),
        "b2": 0.1 * jax.random.normal(ks[7], (out_channels,), f32),
        "m2": 0.1 * jax.random.normal(ks[8], (out_channels,), f32),
        "v2": 0.5 + jax.random.uniform(ks[9], (out_channels,), f32),
    }


if __name__ == "__main__":
    key = jax.random.PRNGKey(0)
    kx, kp = jax.random.split(key)

    N, C, H, W = 2, 4, 16, 16          # residual add requires in_channels == out_channels
    x = jax.random.normal(kx, (N, C, H, W), jnp.float32)
    params = make_params(kp, C, C)

    fwd = jax.jit(resblock_forward)

    # f32 path: exact module semantics.
    out = fwd(x, params)
    jax.block_until_ready(out)
    assert out.shape == (N, C, H, W) and out.dtype == jnp.float32
    ref = resblock_reference(x, params)
    err = float(jnp.max(jnp.abs(out - ref)))
    assert err < 5e-3, f"mismatch vs reference: max abs err = {err}"

    # bf16-streaming path (HBM-bandwidth win when the surrounding model is bf16);
    # looser tolerance since activations/weights/residual are rounded to bf16.
    x_bf16 = x.astype(jnp.bfloat16)
    out_bf16 = fwd(x_bf16, params)
    jax.block_until_ready(out_bf16)
    assert out_bf16.shape == (N, C, H, W) and out_bf16.dtype == jnp.bfloat16
    err_bf = float(jnp.max(jnp.abs(out_bf16.astype(jnp.float32) - ref)))
    assert err_bf < 2.5e-1, f"bf16 mismatch vs reference: max abs err = {err_bf}"

    print("KERNEL_OK")
</pallas_src>

<mosaic_0001>
module attributes {stable_mosaic.version = 11 : i64} {
  func.func @_resblock_kernel(%arg0: i32, %arg1: memref<1x4x256xf32, #tpu.memory_space<vmem>>, %arg2: memref<9x4x4xf32, #tpu.memory_space<vmem>>, %arg3: memref<4x1xf32, #tpu.memory_space<vmem>>, %arg4: memref<4x1xf32, #tpu.memory_space<vmem>>, %arg5: memref<9x4x4xf32, #tpu.memory_space<vmem>>, %arg6: memref<4x1xf32, #tpu.memory_space<vmem>>, %arg7: memref<4x1xf32, #tpu.memory_space<vmem>>, %arg8: memref<1x4x256xf32, #tpu.memory_space<vmem>>, %arg9: memref<4x290xf32, #tpu.memory_space<vmem>>, %arg10: memref<4x290xf32, #tpu.memory_space<vmem>>) attributes {dimension_semantics = [#tpu.dimension_semantics<parallel>], iteration_bounds = array<i64: 2>, scalar_prefetch = 0 : i64, scratch_operands = 2 : i64, tpu.core_type = #tpu.core_type<tc>, window_params = [{transform_indices = @transform_0, window_bounds = array<i64: 1, 4, 256>}, {pipeline_mode = #tpu.pipeline_mode<synchronous>, transform_indices = @transform_1, window_bounds = array<i64: 9, 4, 4>}, {pipeline_mode = #tpu.pipeline_mode<synchronous>, transform_indices = @transform_2, window_bounds = array<i64: 4, 1>}, {pipeline_mode = #tpu.pipeline_mode<synchronous>, transform_indices = @transform_3, window_bounds = array<i64: 4, 1>}, {pipeline_mode = #tpu.pipeline_mode<synchronous>, transform_indices = @transform_4, window_bounds = array<i64: 9, 4, 4>}, {pipeline_mode = #tpu.pipeline_mode<synchronous>, transform_indices = @transform_5, window_bounds = array<i64: 4, 1>}, {pipeline_mode = #tpu.pipeline_mode<synchronous>, transform_indices = @transform_6, window_bounds = array<i64: 4, 1>}, {transform_indices = @transform_7, window_bounds = array<i64: 1, 4, 256>}]} {
    %0 = tpu.iota {dimensions = array<i32: 1>} : vector<1x256xi32>
    %c16_i32 = arith.constant 16 : i32
    %c0_i32 = arith.constant 0 : i32
    %1 = arith.cmpi eq, %c16_i32, %c0_i32 : i32
    %c1_i32 = arith.constant 1 : i32
    %2 = arith.select %1, %c1_i32, %c16_i32 : i32
    %3 = vector.broadcast %2 : i32 to vector<1x256xi32>
    %4 = arith.remsi %0, %3 : vector<1x256xi32>
    %c0_i32_0 = arith.constant 0 : i32
    %5 = vector.broadcast %c0_i32_0 : i32 to vector<1x256xi32>
    %6 = arith.cmpi ne, %4, %5 : vector<1x256xi32>
    %c0_i32_1 = arith.constant 0 : i32
    %7 = vector.broadcast %c0_i32_1 : i32 to vector<1x256xi32>
    %8 = arith.cmpi slt, %4, %7 : vector<1x256xi32>
    %c0_i32_2 = arith.constant 0 : i32
    %9 = arith.cmpi slt, %2, %c0_i32_2 : i32
    %10 = vector.broadcast %9 : i1 to vector<1x256xi1>
    %11 = vector.broadcast %10 : vector<1x256xi1> to vector<1x256xi1>
    %12 = arith.xori %8, %11 : vector<1x256xi1>
    %13 = arith.andi %12, %6 : vector<1x256xi1>
    %14 = vector.broadcast %2 : i32 to vector<1x256xi32>
    %15 = arith.addi %4, %14 : vector<1x256xi32>
    %16 = arith.select %13, %15, %4 : vector<1x256xi1>, vector<1x256xi32>
    %c0_i32_3 = arith.constant 0 : i32
    %17 = vector.broadcast %c0_i32_3 : i32 to vector<1x256xi32>
    %18 = arith.cmpi ne, %16, %17 : vector<1x256xi32>
    %cst = arith.constant 1.000000e+00 : f32
    %cst_4 = arith.constant 0.000000e+00 : f32
    %19 = vector.broadcast %cst : f32 to vector<1x256xf32>
    %20 = vector.broadcast %cst_4 : f32 to vector<1x256xf32>
    %21 = arith.select %18, %19, %20 : vector<1x256xi1>, vector<1x256xf32>
    %c15_i32 = arith.constant 15 : i32
    %22 = vector.broadcast %c15_i32 : i32 to vector<1x256xi32>
    %23 = arith.cmpi ne, %16, %22 : vector<1x256xi32>
    %cst_5 = arith.constant 1.000000e+00 : f32
    %cst_6 = arith.constant 0.000000e+00 : f32
    %24 = vector.broadcast %cst_5 : f32 to vector<1x256xf32>
    %25 = vector.broadcast %cst_6 : f32 to vector<1x256xf32>
    %26 = arith.select %23, %24, %25 : vector<1x256xi1>, vector<1x256xf32>
    %cst_7 = arith.constant 0.000000e+00 : f32
    %27 = vector.broadcast %cst_7 : f32 to vector<4x17xf32>
    %c0 = arith.constant 0 : index
    %c0_8 = arith.constant 0 : index
    %28 = vector.load %arg9[%c0, %c0_8] : memref<4x290xf32, #tpu.memory_space<vmem>>, vector<4x17xf32>
    tpu.vector_store %arg9[%c0, %c0_8], %27 {strides = array<i32>} : memref<4x290xf32, #tpu.memory_space<vmem>>, vector<4x17xf32>,
    %c0_9 = arith.constant 0 : index
    %c273 = arith.constant 273 : index
    %29 = vector.load %arg9[%c0_9, %c273] : memref<4x290xf32, #tpu.memory_space<vmem>>, vector<4x17xf32>
    tpu.vector_store %arg9[%c0_9, %c273], %27 {strides = array<i32>} : memref<4x290xf32, #tpu.memory_space<vmem>>, vector<4x17xf32>,
    %c0_10 = arith.constant 0 : index
    %c0_11 = arith.constant 0 : index
    %30 = vector.load %arg10[%c0_10, %c0_11] : memref<4x290xf32, #tpu.memory_space<vmem>>, vector<4x17xf32>
    tpu.vector_store %arg10[%c0_10, %c0_11], %27 {strides = array<i32>} : memref<4x290xf32, #tpu.memory_space<vmem>>, vector<4x17xf32>,
    %c0_12 = arith.constant 0 : index
    %c273_13 = arith.constant 273 : index
    %31 = vector.load %arg10[%c0_12, %c273_13] : memref<4x290xf32, #tpu.memory_space<vmem>>, vector<4x17xf32>
    tpu.vector_store %arg10[%c0_12, %c273_13], %27 {strides = array<i32>} : memref<4x290xf32, #tpu.memory_space<vmem>>, vector<4x17xf32>,
    %c0_14 = arith.constant 0 : index
    %c0_15 = arith.constant 0 : index
    %c0_16 = arith.constant 0 : index
    %32 = vector.load %arg1[%c0_14, %c0_15, %c0_16] : memref<1x4x256xf32, #tpu.memory_space<vmem>>, vector<1x4x256xf32>
    %33 = vector.shape_cast %32 : vector<1x4x256xf32> to vector<4x256xf32>
    %c0_17 = arith.constant 0 : index
    %c17 = arith.constant 17 : index
    %34 = vector.load %arg9[%c0_17, %c17] : memref<4x290xf32, #tpu.memory_space<vmem>>, vector<4x256xf32>
    tpu.vector_store %arg9[%c0_17, %c17], %33 {strides = array<i32>} : memref<4x290xf32, #tpu.memory_space<vmem>>, vector<4x256xf32>,
    %cst_18 = arith.constant 0.000000e+00 : f32
    %35 = vector.broadcast %cst_18 : f32 to vector<4x256xf32>
    %c0_19 = arith.constant 0 : index
    %c0_20 = arith.constant 0 : index
    %36 = vector.load %arg9[%c0_19, %c0_20] : memref<4x290xf32, #tpu.memory_space<vmem>>, vector<4x256xf32>
    %c0_21 = arith.constant 0 : index
    %c0_22 = arith.constant 0 : index
    %c0_23 = arith.constant 0 : index
    %37 = vector.load %arg2[%c0_21, %c0_22, %c0_23] : memref<9x4x4xf32, #tpu.memory_space<vmem>>, vector<1x4x4xf32>
    %38 = vector.shape_cast %37 : vector<1x4x4xf32> to vector<4x4xf32>
    %cst_24 = arith.constant dense<0.000000e+00> : vector<4x256xf32>
    %39 = tpu.matmul %38, %36, %cst_24 {dimension_numbers = #tpu.dot_dimension_numbers<[1], [0], [0], [1], [0, 0, 1, 1], [], []>} : vector<4x4xf32>, vector<4x256xf32>, vector<4x256xf32> -> vector<4x256xf32>
    %40 = arith.addf %35, %39 : vector<4x256xf32>
    %c0_25 = arith.constant 0 : index
    %c16 = arith.constant 16 : index
    %41 = vector.load %arg9[%c0_25, %c16] : memref<4x290xf32, #tpu.memory_space<vmem>>, vector<4x256xf32>
    %c3 = arith.constant 3 : index
    %c0_26 = arith.constant 0 : index
    %c0_27 = arith.constant 0 : index
    %42 = vector.load %arg2[%c3, %c0_26, %c0_27] : memref<9x4x4xf32, #tpu.memory_space<vmem>>, vector<1x4x4xf32>
    %43 = vector.shape_cast %42 : vector<1x4x4xf32> to vector<4x4xf32>
    %cst_28 = arith.constant dense<0.000000e+00> : vector<4x256xf32>
    %44 = tpu.matmul %43, %41, %cst_28 {dimension_numbers = #tpu.dot_dimension_numbers<[1], [0], [0], [1], [0, 0, 1, 1], [], []>} : vector<4x4xf32>, vector<4x256xf32>, vector<4x256xf32> -> vector<4x256xf32>
    %45 = arith.addf %40, %44 : vector<4x256xf32>
    %c0_29 = arith.constant 0 : index
    %c32 = arith.constant 32 : index
    %46 = vector.load %arg9[%c0_29, %c32] : memref<4x290xf32, #tpu.memory_space<vmem>>, vector<4x256xf32>
    %c6 = arith.constant 6 : index
    %c0_30 = arith.constant 0 : index
    %c0_31 = arith.constant 0 : index
    %47 = vector.load %arg2[%c6, %c0_30, %c0_31] : memref<9x4x4xf32, #tpu.memory_space<vmem>>, vector<1x4x4xf32>
    %48 = vector.shape_cast %47 : vector<1x4x4xf32> to vector<4x4xf32>
    %cst_32 = arith.constant dense<0.000000e+00> : vector<4x256xf32>
    %49 = tpu.matmul %48, %46, %cst_32 {dimension_numbers = #tpu.dot_dimension_numbers<[1], [0], [0], [1], [0, 0, 1, 1], [], []>} : vector<4x4xf32>, vector<4x256xf32>, vector<4x256xf32> -> vector<4x256xf32>
    %50 = arith.addf %45, %49 : vector<4x256xf32>
    %cst_33 = arith.constant 0.000000e+00 : f32
    %51 = vector.broadcast %cst_33 : f32 to vector<4x256xf32>
    %c0_34 = arith.constant 0 : index
    %c1 = arith.constant 1 : index
    %52 = vector.load %arg9[%c0_34, %c1] : memref<4x290xf32, #tpu.memory_space<vmem>>, vector<4x256xf32>
    %c1_35 = arith.constant 1 : index
    %c0_36 = arith.constant 0 : index
    %c0_37 = arith.constant 0 : index
    %53 = vector.load %arg2[%c1_35, %c0_36, %c0_37] : memref<9x4x4xf32, #tpu.memory_space<vmem>>, vector<1x4x4xf32>
    %54 = vector.shape_cast %53 : vector<1x4x4xf32> to vector<4x4xf32>
    %cst_38 = arith.constant dense<0.000000e+00> : vector<4x256xf32>
    %55 = tpu.matmul %54, %52, %cst_38 {dimension_numbers = #tpu.dot_dimension_numbers<[1], [0], [0], [1], [0, 0, 1, 1], [], []>} : vector<4x4xf32>, vector<4x256xf32>, vector<4x256xf32> -> vector<4x256xf32>
    %56 = arith.addf %51, %55 : vector<4x256xf32>
    %c0_39 = arith.constant 0 : index
    %c17_40 = arith.constant 17 : index
    %57 = vector.load %arg9[%c0_39, %c17_40] : memref<4x290xf32, #tpu.memory_space<vmem>>, vector<4x256xf32>
    %c4 = arith.constant 4 : index
    %c0_41 = arith.constant 0 : index
    %c0_42 = arith.constant 0 : index
    %58 = vector.load %arg2[%c4, %c0_41, %c0_42] : memref<9x4x4xf32, #tpu.memory_space<vmem>>, vector<1x4x4xf32>
    %59 = vector.shape_cast %58 : vector<1x4x4xf32> to vector<4x4xf32>
    %cst_43 = arith.constant dense<0.000000e+00> : vector<4x256xf32>
    %60 = tpu.matmul %59, %57, %cst_43 {dimension_numbers = #tpu.dot_dimension_numbers<[1], [0], [0], [1], [0, 0, 1, 1], [], []>} : vector<4x4xf32>, vector<4x256xf32>, vector<4x256xf32> -> vector<4x256xf32>
    %61 = arith.addf %56, %60 : vector<4x256xf32>
    %c0_44 = arith.constant 0 : index
    %c33 = arith.constant 33 : index
    %62 = vector.load %arg9[%c0_44, %c33] : memref<4x290xf32, #tpu.memory_space<vmem>>, vector<4x256xf32>
    %c7 = arith.constant 7 : index
    %c0_45 = arith.constant 0 : index
    %c0_46 = arith.constant 0 : index
    %63 = vector.load %arg2[%c7, %c0_45, %c0_46] : memref<9x4x4xf32, #tpu.memory_space<vmem>>, vector<1x4x4xf32>
    %64 = vector.shape_cast %63 : vector<1x4x4xf32> to vector<4x4xf32>
    %cst_47 = arith.constant dense<0.000000e+00> : vector<4x256xf32>
    %65 = tpu.matmul %64, %62, %cst_47 {dimension_numbers = #tpu.dot_dimension_numbers<[1], [0], [0], [1], [0, 0, 1, 1], [], []>} : vector<4x4xf32>, vector<4x256xf32>, vector<4x256xf32> -> vector<4x256xf32>
    %66 = arith.addf %61, %65 : vector<4x256xf32>
    %cst_48 = arith.constant 0.000000e+00 : f32
    %67 = vector.broadcast %cst_48 : f32 to vector<4x256xf32>
    %c0_49 = arith.constant 0 : index
    %c2 = arith.constant 2 : index
    %68 = vector.load %arg9[%c0_49, %c2] : memref<4x290xf32, #tpu.memory_space<vmem>>, vector<4x256xf32>
    %c2_50 = arith.constant 2 : index
    %c0_51 = arith.constant 0 : index
    %c0_52 = arith.constant 0 : index
    %69 = vector.load %arg2[%c2_50, %c0_51, %c0_52] : memref<9x4x4xf32, #tpu.memory_space<vmem>>, vector<1x4x4xf32>
    %70 = vector.shape_cast %69 : vector<1x4x4xf32> to vector<4x4xf32>
    %cst_53 = arith.constant dense<0.000000e+00> : vector<4x256xf32>
    %71 = tpu.matmul %70, %68, %cst_53 {dimension_numbers = #tpu.dot_dimension_numbers<[1], [0], [0], [1], [0, 0, 1, 1], [], []>} : vector<4x4xf32>, vector<4x256xf32>, vector<4x256xf32> -> vector<4x256xf32>
    %72 = arith.addf %67, %71 : vector<4x256xf32>
    %c0_54 = arith.constant 0 : index
    %c18 = arith.constant 18 : index
    %73 = vector.load %arg9[%c0_54, %c18] : memref<4x290xf32, #tpu.memory_space<vmem>>, vector<4x256xf32>
    %c5 = arith.constant 5 : index
    %c0_55 = arith.constant 0 : index
    %c0_56 = arith.constant 0 : index
    %74 = vector.load %arg2[%c5, %c0_55, %c0_56] : memref<9x4x4xf32, #tpu.memory_space<vmem>>, vector<1x4x4xf32>
    %75 = vector.shape_cast %74 : vector<1x4x4xf32> to vector<4x4xf32>
    %cst_57 = arith.constant dense<0.000000e+00> : vector<4x256xf32>
    %76 = tpu.matmul %75, %73, %cst_57 {dimension_numbers = #tpu.dot_dimension_numbers<[1], [0], [0], [1], [0, 0, 1, 1], [], []>} : vector<4x4xf32>, vector<4x256xf32>, vector<4x256xf32> -> vector<4x256xf32>
    %77 = arith.addf %72, %76 : vector<4x256xf32>
    %c0_58 = arith.constant 0 : index
    %c34 = arith.constant 34 : index
    %78 = vector.load %arg9[%c0_58, %c34] : memref<4x290xf32, #tpu.memory_space<vmem>>, vector<4x256xf32>
    %c8 = arith.constant 8 : index
    %c0_59 = arith.constant 0 : index
    %c0_60 = arith.constant 0 : index
    %79 = vector.load %arg2[%c8, %c0_59, %c0_60] : memref<9x4x4xf32, #tpu.memory_space<vmem>>, vector<1x4x4xf32>
    %80 = vector.shape_cast %79 : vector<1x4x4xf32> to vector<4x4xf32>
    %cst_61 = arith.constant dense<0.000000e+00> : vector<4x256xf32>
    %81 = tpu.matmul %80, %78, %cst_61 {dimension_numbers = #tpu.dot_dimension_numbers<[1], [0], [0], [1], [0, 0, 1, 1], [], []>} : vector<4x4xf32>, vector<4x256xf32>, vector<4x256xf32> -> vector<4x256xf32>
    %82 = arith.addf %77, %81 : vector<4x256xf32>
    %83 = vector.broadcast %21 : vector<1x256xf32> to vector<4x256xf32>
    %84 = arith.mulf %83, %50 : vector<4x256xf32>
    %85 = arith.addf %66, %84 : vector<4x256xf32>
    %86 = vector.broadcast %26 : vector<1x256xf32> to vector<4x256xf32>
    %87 = arith.mulf %86, %82 : vector<4x256xf32>
    %88 = arith.addf %85, %87 : vector<4x256xf32>
    %c0_62 = arith.constant 0 : index
    %c0_63 = arith.constant 0 : index
    %89 = vector.load %arg3[%c0_62, %c0_63] : memref<4x1xf32, #tpu.memory_space<vmem>>, vector<4x1xf32>
    %90 = vector.broadcast %89 : vector<4x1xf32> to vector<4x256xf32>
    %91 = arith.mulf %88, %90 : vector<4x256xf32>
    %c0_64 = arith.constant 0 : index
    %c0_65 = arith.constant 0 : index
    %92 = vector.load %arg4[%c0_64, %c0_65] : memref<4x1xf32, #tpu.memory_space<vmem>>, vector<4x1xf32>
    %93 = vector.broadcast %92 : vector<4x1xf32> to vector<4x256xf32>
    %94 = arith.addf %91, %93 : vector<4x256xf32>
    %cst_66 = arith.constant 0.000000e+00 : f32
    %95 = vector.broadcast %cst_66 : f32 to vector<4x256xf32>
    %96 = arith.cmpf oge, %94, %95 : vector<4x256xf32>
    %cst_67 = arith.constant 2.000000e-01 : f32
    %97 = vector.broadcast %cst_67 : f32 to vector<4x256xf32>
    %98 = arith.mulf %97, %94 : vector<4x256xf32>
    %99 = arith.select %96, %94, %98 : vector<4x256xi1>, vector<4x256xf32>
    %c0_68 = arith.constant 0 : index
    %c17_69 = arith.constant 17 : index
    %100 = vector.load %arg10[%c0_68, %c17_69] : memref<4x290xf32, #tpu.memory_space<vmem>>, vector<4x256xf32>
    tpu.vector_store %arg10[%c0_68, %c17_69], %99 {strides = array<i32>} : memref<4x290xf32, #tpu.memory_space<vmem>>, vector<4x256xf32>,
    %cst_70 = arith.constant 0.000000e+00 : f32
    %101 = vector.broadcast %cst_70 : f32 to vector<4x256xf32>
    %c0_71 = arith.constant 0 : index
    %c0_72 = arith.constant 0 : index
    %102 = vector.load %arg10[%c0_71, %c0_72] : memref<4x290xf32, #tpu.memory_space<vmem>>, vector<4x256xf32>
    %c0_73 = arith.constant 0 : index
    %c0_74 = arith.constant 0 : index
    %c0_75 = arith.constant 0 : index
    %103 = vector.load %arg5[%c0_73, %c0_74, %c0_75] : memref<9x4x4xf32, #tpu.memory_space<vmem>>, vector<1x4x4xf32>
    %104 = vector.shape_cast %103 : vector<1x4x4xf32> to vector<4x4xf32>
    %cst_76 = arith.constant dense<0.000000e+00> : vector<4x256xf32>
    %105 = tpu.matmul %104, %102, %cst_76 {dimension_numbers = #tpu.dot_dimension_numbers<[1], [0], [0], [1], [0, 0, 1, 1], [], []>} : vector<4x4xf32>, vector<4x256xf32>, vector<4x256xf32> -> vector<4x256xf32>
    %106 = arith.addf %101, %105 : vector<4x256xf32>
    %c0_77 = arith.constant 0 : index
    %c16_78 = arith.constant 16 : index
    %107 = vector.load %arg10[%c0_77, %c16_78] : memref<4x290xf32, #tpu.memory_space<vmem>>, vector<4x256xf32>
    %c3_79 = arith.constant 3 : index
    %c0_80 = arith.constant 0 : index
    %c0_81 = arith.constant 0 : index
    %108 = vector.load %arg5[%c3_79, %c0_80, %c0_81] : memref<9x4x4xf32, #tpu.memory_space<vmem>>, vector<1x4x4xf32>
    %109 = vector.shape_cast %108 : vector<1x4x4xf32> to vector<4x4xf32>
    %cst_82 = arith.constant dense<0.000000e+00> : vector<4x256xf32>
    %110 = tpu.matmul %109, %107, %cst_82 {dimension_numbers = #tpu.dot_dimension_numbers<[1], [0], [0], [1], [0, 0, 1, 1], [], []>} : vector<4x4xf32>, vector<4x256xf32>, vector<4x256xf32> -> vector<4x256xf32>
    %111 = arith.addf %106, %110 : vector<4x256xf32>
    %c0_83 = arith.constant 0 : index
    %c32_84 = arith.constant 32 : index
    %112 = vector.load %arg10[%c0_83, %c32_84] : memref<4x290xf32, #tpu.memory_space<vmem>>, vector<4x256xf32>
    %c6_85 = arith.constant 6 : index
    %c0_86 = arith.constant 0 : index
    %c0_87 = arith.constant 0 : index
    %113 = vector.load %arg5[%c6_85, %c0_86, %c0_87] : memref<9x4x4xf32, #tpu.memory_space<vmem>>, vector<1x4x4xf32>
    %114 = vector.shape_cast %113 : vector<1x4x4xf32> to vector<4x4xf32>
    %cst_88 = arith.constant dense<0.000000e+00> : vector<4x256xf32>
    %115 = tpu.matmul %114, %112, %cst_88 {dimension_numbers = #tpu.dot_dimension_numbers<[1], [0], [0], [1], [0, 0, 1, 1], [], []>} : vector<4x4xf32>, vector<4x256xf32>, vector<4x256xf32> -> vector<4x256xf32>
    %116 = arith.addf %111, %115 : vector<4x256xf32>
    %cst_89 = arith.constant 0.000000e+00 : f32
    %117 = vector.broadcast %cst_89 : f32 to vector<4x256xf32>
    %c0_90 = arith.constant 0 : index
    %c1_91 = arith.constant 1 : index
    %118 = vector.load %arg10[%c0_90, %c1_91] : memref<4x290xf32, #tpu.memory_space<vmem>>, vector<4x256xf32>
    %c1_92 = arith.constant 1 : index
    %c0_93 = arith.constant 0 : index
    %c0_94 = arith.constant 0 : index
    %119 = vector.load %arg5[%c1_92, %c0_93, %c0_94] : memref<9x4x4xf32, #tpu.memory_space<vmem>>, vector<1x4x4xf32>
    %120 = vector.shape_cast %119 : vector<1x4x4xf32> to vector<4x4xf32>
    %cst_95 = arith.constant dense<0.000000e+00> : vector<4x256xf32>
    %121 = tpu.matmul %120, %118, %cst_95 {dimension_numbers = #tpu.dot_dimension_numbers<[1], [0], [0], [1], [0, 0, 1, 1], [], []>} : vector<4x4xf32>, vector<4x256xf32>, vector<4x256xf32> -> vector<4x256xf32>
    %122 = arith.addf %117, %121 : vector<4x256xf32>
    %c0_96 = arith.constant 0 : index
    %c17_97 = arith.constant 17 : index
    %123 = vector.load %arg10[%c0_96, %c17_97] : memref<4x290xf32, #tpu.memory_space<vmem>>, vector<4x256xf32>
    %c4_98 = arith.constant 4 : index
    %c0_99 = arith.constant 0 : index
    %c0_100 = arith.constant 0 : index
    %124 = vector.load %arg5[%c4_98, %c0_99, %c0_100] : memref<9x4x4xf32, #tpu.memory_space<vmem>>, vector<1x4x4xf32>
    %125 = vector.shape_cast %124 : vector<1x4x4xf32> to vector<4x4xf32>
    %cst_101 = arith.constant dense<0.000000e+00> : vector<4x256xf32>
    %126 = tpu.matmul %125, %123, %cst_101 {dimension_numbers = #tpu.dot_dimension_numbers<[1], [0], [0], [1], [0, 0, 1, 1], [], []>} : vector<4x4xf32>, vector<4x256xf32>, vector<4x256xf32> -> vector<4x256xf32>
    %127 = arith.addf %122, %126 : vector<4x256xf32>
    %c0_102 = arith.constant 0 : index
    %c33_103 = arith.constant 33 : index
    %128 = vector.load %arg10[%c0_102, %c33_103] : memref<4x290xf32, #tpu.memory_space<vmem>>, vector<4x256xf32>
    %c7_104 = arith.constant 7 : index
    %c0_105 = arith.constant 0 : index
    %c0_106 = arith.constant 0 : index
    %129 = vector.load %arg5[%c7_104, %c0_105, %c0_106] : memref<9x4x4xf32, #tpu.memory_space<vmem>>, vector<1x4x4xf32>
    %130 = vector.shape_cast %129 : vector<1x4x4xf32> to vector<4x4xf32>
    %cst_107 = arith.constant dense<0.000000e+00> : vector<4x256xf32>
    %131 = tpu.matmul %130, %128, %cst_107 {dimension_numbers = #tpu.dot_dimension_numbers<[1], [0], [0], [1], [0, 0, 1, 1], [], []>} : vector<4x4xf32>, vector<4x256xf32>, vector<4x256xf32> -> vector<4x256xf32>
    %132 = arith.addf %127, %131 : vector<4x256xf32>
    %cst_108 = arith.constant 0.000000e+00 : f32
    %133 = vector.broadcast %cst_108 : f32 to vector<4x256xf32>
    %c0_109 = arith.constant 0 : index
    %c2_110 = arith.constant 2 : index
    %134 = vector.load %arg10[%c0_109, %c2_110] : memref<4x290xf32, #tpu.memory_space<vmem>>, vector<4x256xf32>
    %c2_111 = arith.constant 2 : index
    %c0_112 = arith.constant 0 : index
    %c0_113 = arith.constant 0 : index
    %135 = vector.load %arg5[%c2_111, %c0_112, %c0_113] : memref<9x4x4xf32, #tpu.memory_space<vmem>>, vector<1x4x4xf32>
    %136 = vector.shape_cast %135 : vector<1x4x4xf32> to vector<4x4xf32>
    %cst_114 = arith.constant dense<0.000000e+00> : vector<4x256xf32>
    %137 = tpu.matmul %136, %134, %cst_114 {dimension_numbers = #tpu.dot_dimension_numbers<[1], [0], [0], [1], [0, 0, 1, 1], [], []>} : vector<4x4xf32>, vector<4x256xf32>, vector<4x256xf32> -> vector<4x256xf32>
    %138 = arith.addf %133, %137 : vector<4x256xf32>
    %c0_115 = arith.constant 0 : index
    %c18_116 = arith.constant 18 : index
    %139 = vector.load %arg10[%c0_115, %c18_116] : memref<4x290xf32, #tpu.memory_space<vmem>>, vector<4x256xf32>
    %c5_117 = arith.constant 5 : index
    %c0_118 = arith.constant 0 : index
    %c0_119 = arith.constant 0 : index
    %140 = vector.load %arg5[%c5_117, %c0_118, %c0_119] : memref<9x4x4xf32, #tpu.memory_space<vmem>>, vector<1x4x4xf32>
    %141 = vector.shape_cast %140 : vector<1x4x4xf32> to vector<4x4xf32>
    %cst_120 = arith.constant dense<0.000000e+00> : vector<4x256xf32>
    %142 = tpu.matmul %141, %139, %cst_120 {dimension_numbers = #tpu.dot_dimension_numbers<[1], [0], [0], [1], [0, 0, 1, 1], [], []>} : vector<4x4xf32>, vector<4x256xf32>, vector<4x256xf32> -> vector<4x256xf32>
    %143 = arith.addf %138, %142 : vector<4x256xf32>
    %c0_121 = arith.constant 0 : index
    %c34_122 = arith.constant 34 : index
    %144 = vector.load %arg10[%c0_121, %c34_122] : memref<4x290xf32, #tpu.memory_space<vmem>>, vector<4x256xf32>
    %c8_123 = arith.constant 8 : index
    %c0_124 = arith.constant 0 : index
    %c0_125 = arith.constant 0 : index
    %145 = vector.load %arg5[%c8_123, %c0_124, %c0_125] : memref<9x4x4xf32, #tpu.memory_space<vmem>>, vector<1x4x4xf32>
    %146 = vector.shape_cast %145 : vector<1x4x4xf32> to vector<4x4xf32>
    %cst_126 = arith.constant dense<0.000000e+00> : vector<4x256xf32>
    %147 = tpu.matmul %146, %144, %cst_126 {dimension_numbers = #tpu.dot_dimension_numbers<[1], [0], [0], [1], [0, 0, 1, 1], [], []>} : vector<4x4xf32>, vector<4x256xf32>, vector<4x256xf32> -> vector<4x256xf32>
    %148 = arith.addf %143, %147 : vector<4x256xf32>
    %149 = vector.broadcast %21 : vector<1x256xf32> to vector<4x256xf32>
    %150 = arith.mulf %149, %116 : vector<4x256xf32>
    %151 = arith.addf %132, %150 : vector<4x256xf32>
    %152 = vector.broadcast %26 : vector<1x256xf32> to vector<4x256xf32>
    %153 = arith.mulf %152, %148 : vector<4x256xf32>
    %154 = arith.addf %151, %153 : vector<4x256xf32>
    %c0_127 = arith.constant 0 : index
    %c0_128 = arith.constant 0 : index
    %155 = vector.load %arg6[%c0_127, %c0_128] : memref<4x1xf32, #tpu.memory_space<vmem>>, vector<4x1xf32>
    %156 = vector.broadcast %155 : vector<4x1xf32> to vector<4x256xf32>
    %157 = arith.mulf %154, %156 : vector<4x256xf32>
    %c0_129 = arith.constant 0 : index
    %c0_130 = arith.constant 0 : index
    %158 = vector.load %arg7[%c0_129, %c0_130] : memref<4x1xf32, #tpu.memory_space<vmem>>, vector<4x1xf32>
    %159 = vector.broadcast %158 : vector<4x1xf32> to vector<4x256xf32>
    %160 = arith.addf %157, %159 : vector<4x256xf32>
    %cst_131 = arith.constant 0.000000e+00 : f32
    %161 = vector.broadcast %cst_131 : f32 to vector<4x256xf32>
    %162 = arith.cmpf oge, %160, %161 : vector<4x256xf32>
    %cst_132 = arith.constant 2.000000e-01 : f32
    %163 = vector.broadcast %cst_132 : f32 to vector<4x256xf32>
    %164 = arith.mulf %163, %160 : vector<4x256xf32>
    %165 = arith.select %162, %160, %164 : vector<4x256xi1>, vector<4x256xf32>
    %166 = arith.addf %165, %33 : vector<4x256xf32>
    %c0_133 = arith.constant 0 : index
    %c0_134 = arith.constant 0 : index
    %c0_135 = arith.constant 0 : index
    %167 = vector.load %arg8[%c0_133, %c0_134, %c0_135] : memref<1x4x256xf32, #tpu.memory_space<vmem>>, vector<1x4x256xf32>
    %168 = vector.shape_cast %167 : vector<1x4x256xf32> to vector<4x256xf32>
    %169 = vector.shape_cast %166 : vector<4x256xf32> to vector<1x4x256xf32>
    tpu.vector_store %arg8[%c0_133, %c0_134, %c0_135], %169 {strides = array<i32>} : memref<1x4x256xf32, #tpu.memory_space<vmem>>, vector<1x4x256xf32>,
    return
  }
  func.func @transform_0(%arg0: i32) -> (i32, i32, i32) {
    %c0_i32 = arith.constant 0 : i32
    %c0_i32_0 = arith.constant 0 : i32
    %c0_i32_1 = arith.constant 0 : i32
    return %arg0, %c0_i32, %c0_i32_0 : i32, i32, i32
  }
  func.func @transform_1(%arg0: i32) -> (i32, i32, i32) {
    %c0_i32 = arith.constant 0 : i32
    %c0_i32_0 = arith.constant 0 : i32
    %c0_i32_1 = arith.constant 0 : i32
    %c0_i32_2 = arith.constant 0 : i32
    return %c0_i32, %c0_i32_0, %c0_i32_1 : i32, i32, i32
  }
  func.func @transform_2(%arg0: i32) -> (i32, i32) {
    %c0_i32 = arith.constant 0 : i32
    %c0_i32_0 = arith.constant 0 : i32
    %c0_i32_1 = arith.constant 0 : i32
    return %c0_i32, %c0_i32_0 : i32, i32
  }
  func.func @transform_3(%arg0: i32) -> (i32, i32) {
    %c0_i32 = arith.constant 0 : i32
    %c0_i32_0 = arith.constant 0 : i32
    %c0_i32_1 = arith.constant 0 : i32
    return %c0_i32, %c0_i32_0 : i32, i32
  }
  func.func @transform_4(%arg0: i32) -> (i32, i32, i32) {
    %c0_i32 = arith.constant 0 : i32
    %c0_i32_0 = arith.constant 0 : i32
    %c0_i32_1 = arith.constant 0 : i32
    %c0_i32_2 = arith.constant 0 : i32
    return %c0_i32, %c0_i32_0, %c0_i32_1 : i32, i32, i32
  }
  func.func @transform_5(%arg0: i32) -> (i32, i32) {
    %c0_i32 = arith.constant 0 : i32
    %c0_i32_0 = arith.constant 0 : i32
    %c0_i32_1 = arith.constant 0 : i32
    return %c0_i32, %c0_i32_0 : i32, i32
  }
  func.func @transform_6(%arg0: i32) -> (i32, i32) {
    %c0_i32 = arith.constant 0 : i32
    %c0_i32_0 = arith.constant 0 : i32
    %c0_i32_1 = arith.constant 0 : i32
    return %c0_i32, %c0_i32_0 : i32, i32
  }
  func.func @transform_7(%arg0: i32) -> (i32, i32, i32) {
    %c0_i32 = arith.constant 0 : i32
    %c0_i32_0 = arith.constant 0 : i32
    %c0_i32_1 = arith.constant 0 : i32
    return %arg0, %c0_i32, %c0_i32_0 : i32, i32, i32
  }
}

</mosaic_0001>

<llo_original>
// kernel: resblock_forward.1
$region0: #{resblock_forward.1}
  #allocation0 [shape = 'u32[]', space=smem, size = 0x4, offset = 0x4, fixed_abs, tag = 'smem constant byte address 0x4 - core index']
  #allocation1 [shape = 'u32[144,128]{1,0:T(1,128)}', space=vmem, size = 0x12000, scoped, tag = 'internal scratch']
  #allocation2 [shape = 'f32[4,290]{1,0:T(4,128)}', space=vmem, size = 0x1800, scoped, tag = 'scratch operand']
  #allocation3 [shape = 'f32[4,290]{1,0:T(4,128)}', space=vmem, size = 0x1800, scoped, tag = 'scratch operand']
  %s0 = inlined_call_operand.vmem [shape: f32[2,4,256], index: 0, kind: input, shape index: {}]
  %s1 = inlined_call_operand.vmem [shape: f32[9,4,4], index: 1, kind: input, shape index: {}]
  %s2 = inlined_call_operand.vmem [shape: f32[4,1], index: 2, kind: input, shape index: {}]
  %s3 = inlined_call_operand.vmem [shape: f32[4,1], index: 3, kind: input, shape index: {}]
  %s4 = inlined_call_operand.vmem [shape: f32[9,4,4], index: 4, kind: input, shape index: {}]
  %s5 = inlined_call_operand.vmem [shape: f32[4,1], index: 5, kind: input, shape index: {}]
  %s6 = inlined_call_operand.vmem [shape: f32[4,1], index: 6, kind: input, shape index: {}]
  %s7 = inlined_call_operand.vmem [shape: f32[2,4,256], index: 7, kind: output, shape index: {}]
  %s8 = sld [smem:[#allocation0]]
  $region61: #{resblock_forward.1} parent=0
    _
  %s10 = ssub.s32 1, %s8
  %s11 = scalar_select 0, %s10, %s8
  loop: start=0, step=1, limit=4
  $region2: #{resblock_forward.1} parent=0 // loop_pre_header
    _
  $region3: #{resblock_forward.1} parent=0 // loop_header
    %s13 = sphi 0, %s17
    %p14 = scmp.ge.s32.totalorder %s13, 4
    %s23 = sphi 0, %s25
    %s26 = sphi 0, %s23
    %s27 = sphi 0, %s26
    %s43 = sphi 0, %s27
    %s47 = sphi 0, %s47
    %s49 = sphi 0, %s47
    %s50 = sphi 0, %s49
    %s64 = sphi 0, %s50
    %s68 = sphi 0, %s68
    %s70 = sphi 0, %s68
    %s71 = sphi 0, %s70
    %s85 = sphi 0, %s71
    %s89 = sphi 0, %s89
    %s91 = sphi 0, %s89
    %s92 = sphi 0, %s91
    %s106 = sphi 0, %s92
    %s110 = sphi 0, %s110
    %s112 = sphi 0, %s110
    %s113 = sphi 0, %s112
    %s127 = sphi 0, %s113
    %s131 = sphi 0, %s131
    %s133 = sphi 0, %s131
    %s134 = sphi 0, %s133
    %s148 = sphi 0, %s134
    %s152 = sphi 0, %s152
    %s154 = sphi 0, %s152
    %s155 = sphi 0, %s154
    %s169 = sphi 0, %s155
    %s175 = sphi 0, %s177
    %s178 = sphi 0, %s175
    %s179 = sphi 0, %s178
    %s195 = sphi 0, %s179
  $region4: #{resblock_forward.1} parent=0 // loop_header_branch
    %16 = sbr.rel (%p14) target = $region8
  $region5: #{resblock_forward.1} parent=0 // loop_body
    %s18 = ssub.s32 %s13, 1
    %s19 = ssub.s32 %s13, 2
    %s20 = sadd.s32 %s13, 1
    %s21 = ssub.s32 %s13, %s20
    %p22 = scmp.eq.s32.totalorder %s21, 0
    %s24 = sadd.s32 %s23, 1
    %s25 = scalar_select %p22, %s23, %s24
    %p28 = pneg %p22
    %p29 = scmp.eq.s32.totalorder %s13, 1
    %p30 = por %p28, %p29
    %p31 = scmp.ne.s32.totalorder %s23, %s26
    %p32 = scmp.eq.s32.totalorder %s13, 0
    %p33 = por %p31, %p32
    %p34 = scmp.ne.s32.totalorder %s23, %s26
    %p35 = scmp.eq.s32.totalorder %s18, 1
    %p36 = por %p34, %p35
    %p37 = scmp.ne.s32.totalorder %s26, %s27
    %p38 = scmp.eq.s32.totalorder %s18, 0
    %p39 = por %p37, %p38
    %p40 = scmp.ne.s32.totalorder %s26, %s27
    %p41 = scmp.eq.s32.totalorder %s19, 1
    %p42 = por %p40, %p41
    %p44 = scmp.ne.s32.totalorder %s27, %s43
    %p45 = scmp.eq.s32.totalorder %s19, 0
    %p46 = por %p44, %p45
    %s48 = sadd.s32 %s47, 1
    %p51 = scmp.eq.s32.totalorder %s13, 1
    %p52 = scmp.ne.s32.totalorder %s47, %s49
    %p53 = scmp.eq.s32.totalorder %s13, 0
    %p54 = por %p52, %p53
    %p55 = scmp.ne.s32.totalorder %s47, %s49
    %p56 = scmp.eq.s32.totalorder %s18, 1
    %p57 = por %p55, %p56
    %p58 = scmp.ne.s32.totalorder %s49, %s50
    %p59 = scmp.eq.s32.totalorder %s18, 0
    %p60 = por %p58, %p59
    %p61 = scmp.ne.s32.totalorder %s49, %s50
    %p62 = scmp.eq.s32.totalorder %s19, 1
    %p63 = por %p61, %p62
    %p65 = scmp.ne.s32.totalorder %s50, %s64
    %p66 = scmp.eq.s32.totalorder %s19, 0
    %p67 = por %p65, %p66
    %s69 = sadd.s32 %s68, 1
    %p72 = scmp.eq.s32.totalorder %s13, 1
    %p73 = scmp.ne.s32.totalorder %s68, %s70
    %p74 = scmp.eq.s32.totalorder %s13, 0
    %p75 = por %p73, %p74
    %p76 = scmp.ne.s32.totalorder %s68, %s70
    %p77 = scmp.eq.s32.totalorder %s18, 1
    %p78 = por %p76, %p77
    %p79 = scmp.ne.s32.totalorder %s70, %s71
    %p80 = scmp.eq.s32.totalorder %s18, 0
    %p81 = por %p79, %p80
    %p82 = scmp.ne.s32.totalorder %s70, %s71
    %p83 = scmp.eq.s32.totalorder %s19, 1
    %p84 = por %p82, %p83
    %p86 = scmp.ne.s32.totalorder %s71, %s85
    %p87 = scmp.eq.s32.totalorder %s19, 0
    %p88 = por %p86, %p87
    %s90 = sadd.s32 %s89, 1
    %p93 = scmp.eq.s32.totalorder %s13, 1
    %p94 = scmp.ne.s32.totalorder %s89, %s91
    %p95 = scmp.eq.s32.totalorder %s13, 0
    %p96 = por %p94, %p95
    %p97 = scmp.ne.s32.totalorder %s89, %s91
    %p98 = scmp.eq.s32.totalorder %s18, 1
    %p99 = por %p97, %p98
    %p100 = scmp.ne.s32.totalorder %s91, %s92
    %p101 = scmp.eq.s32.totalorder %s18, 0
    %p102 = por %p100, %p101
    %p103 = scmp.ne.s32.totalorder %s91, %s92
    %p104 = scmp.eq.s32.totalorder %s19, 1
    %p105 = por %p103, %p104
    %p107 = scmp.ne.s32.totalorder %s92, %s106
    %p108 = scmp.eq.s32.totalorder %s19, 0
    %p109 = por %p107, %p108
    %s111 = sadd.s32 %s110, 1
    %p114 = scmp.eq.s32.totalorder %s13, 1
    %p115 = scmp.ne.s32.totalorder %s110, %s112
    %p116 = scmp.eq.s32.totalorder %s13, 0
    %p117 = por %p115, %p116
    %p118 = scmp.ne.s32.totalorder %s110, %s112
    %p119 = scmp.eq.s32.totalorder %s18, 1
    %p120 = por %p118, %p119
    %p121 = scmp.ne.s32.totalorder %s112, %s113
    %p122 = scmp.eq.s32.totalorder %s18, 0
    %p123 = por %p121, %p122
    %p124 = scmp.ne.s32.totalorder %s112, %s113
    %p125 = scmp.eq.s32.totalorder %s19, 1
    %p126 = por %p124, %p125
    %p128 = scmp.ne.s32.totalorder %s113, %s127
    %p129 = scmp.eq.s32.totalorder %s19, 0
    %p130 = por %p128, %p129
    %s132 = sadd.s32 %s131, 1
    %p135 = scmp.eq.s32.totalorder %s13, 1
    %p136 = scmp.ne.s32.totalorder %s131, %s133
    %p137 = scmp.eq.s32.totalorder %s13, 0
    %p138 = por %p136, %p137
    %p139 = scmp.ne.s32.totalorder %s131, %s133
    %p140 = scmp.eq.s32.totalorder %s18, 1
    %p141 = por %p139, %p140
    %p142 = scmp.ne.s32.totalorder %s133, %s134
    %p143 = scmp.eq.s32.totalorder %s18, 0
    %p144 = por %p142, %p143
    %p145 = scmp.ne.s32.totalorder %s133, %s134
    %p146 = scmp.eq.s32.totalorder %s19, 1
    %p147 = por %p145, %p146
    %p149 = scmp.ne.s32.totalorder %s134, %s148
    %p150 = scmp.eq.s32.totalorder %s19, 0
    %p151 = por %p149, %p150
    %s153 = sadd.s32 %s152, 1
    %p156 = scmp.eq.s32.totalorder %s13, 1
    %p157 = scmp.ne.s32.totalorder %s152, %s154
    %p158 = scmp.eq.s32.totalorder %s13, 0
    %p159 = por %p157, %p158
    %p160 = scmp.ne.s32.totalorder %s152, %s154
    %p161 = scmp.eq.s32.totalorder %s18, 1
    %p162 = por %p160, %p161
    %p163 = scmp.ne.s32.totalorder %s154, %s155
    %p164 = scmp.eq.s32.totalorder %s18, 0
    %p165 = por %p163, %p164
    %p166 = scmp.ne.s32.totalorder %s154, %s155
    %p167 = scmp.eq.s32.totalorder %s19, 1
    %p168 = por %p166, %p167
    %p170 = scmp.ne.s32.totalorder %s155, %s169
    %p171 = scmp.eq.s32.totalorder %s19, 0
    %p172 = por %p170, %p171
    %s173 = ssub.s32 %s13, %s20
    %p174 = scmp.eq.s32.totalorder %s173, 0
    %s176 = sadd.s32 %s175, 1
    %s177 = scalar_select %p174, %s175, %s176
    %p180 = pneg %p174
    %p181 = scmp.eq.s32.totalorder %s13, 1
    %p182 = por %p180, %p181
    %p183 = scmp.ne.s32.totalorder %s175, %s178
    %p184 = scmp.eq.s32.totalorder %s13, 0
    %p185 = por %p183, %p184
    %p186 = scmp.ne.s32.totalorder %s175, %s178
    %p187 = scmp.eq.s32.totalorder %s18, 1
    %p188 = por %p186, %p187
    %p189 = scmp.ne.s32.totalorder %s178, %s179
    %p190 = scmp.eq.s32.totalorder %s18, 0
    %p191 = por %p189, %p190
    %p192 = scmp.ne.s32.totalorder %s178, %s179
    %p193 = scmp.eq.s32.totalorder %s19, 1
    %p194 = por %p192, %p193
    %p196 = scmp.ne.s32.totalorder %s179, %s195
    %p197 = scmp.eq.s32.totalorder %s19, 0
    %p198 = por %p196, %p197
    %p199 = scmp.le.s32.totalorder 1, %s13
    %p200 = scmp.lt.s32.totalorder %s13, 3
    %p201 = pnand %p199, %p200
    %p202 = pneg %p201
    // Predicated region
    $region9: #{resblock_forward.1} parent=5 // pred_check
      _
    $region10: #{resblock_forward.1} parent=5 // pred_check_branch
      %204 = sbr.rel (%p201) target = $region12
    $region11: #{resblock_forward.1} parent=5 // pred_region
      %s205 = ssub.s32 %s13, 1
      // Predicated region
      $region13: #{resblock_forward.1} parent=11 // pred_check
        %p206 = pneg %p60
      $region14: #{resblock_forward.1} parent=11 // pred_check_branch
        %208 = sbr.rel (%p206) target = $region16
      $region15: #{resblock_forward.1} parent=11 // pred_region
        _
      $region16: #{resblock_forward.1} parent=11 // pred_fallthru
        _
      // Predicated region
      $region17: #{resblock_forward.1} parent=11 // pred_check
        %p209 = pneg %p81
      $region18: #{resblock_forward.1} parent=11 // pred_check_branch
        %211 = sbr.rel (%p209) target = $region20
      $region19: #{resblock_forward.1} parent=11 // pred_region
        _
      $region20: #{resblock_forward.1} parent=11 // pred_fallthru
        _
      // Predicated region
      $region21: #{resblock_forward.1} parent=11 // pred_check
        %p212 = pneg %p102
      $region22: #{resblock_forward.1} parent=11 // pred_check_branch
        %214 = sbr.rel (%p212) target = $region24
      $region23: #{resblock_forward.1} parent=11 // pred_region
        _
      $region24: #{resblock_forward.1} parent=11 // pred_fallthru
        _
      // Predicated region
      $region25: #{resblock_forward.1} parent=11 // pred_check
        %p215 = pneg %p123
      $region26: #{resblock_forward.1} parent=11 // pred_check_branch
        %217 = sbr.rel (%p215) target = $region28
      $region27: #{resblock_forward.1} parent=11 // pred_region
        _
      $region28: #{resblock_forward.1} parent=11 // pred_fallthru
        _
      // Predicated region
      $region29: #{resblock_forward.1} parent=11 // pred_check
        %p218 = pneg %p144
      $region30: #{resblock_forward.1} parent=11 // pred_check_branch
        %220 = sbr.rel (%p218) target = $region32
      $region31: #{resblock_forward.1} parent=11 // pred_region
        _
      $region32: #{resblock_forward.1} parent=11 // pred_fallthru
        _
      // Predicated region
      $region33: #{resblock_forward.1} parent=11 // pred_check
        %p221 = pneg %p165
      $region34: #{resblock_forward.1} parent=11 // pred_check_branch
        %223 = sbr.rel (%p221) target = $region36
      $region35: #{resblock_forward.1} parent=11 // pred_region
        _
      $region36: #{resblock_forward.1} parent=11 // pred_fallthru
        _
    $region12: #{resblock_forward.1} parent=5 // pred_fallthru
      _
    %p224 = scmp.lt.s32.totalorder %s13, 2
    // Predicated region
    $region37: #{resblock_forward.1} parent=5 // pred_check
      %p225 = pneg %p224
    $region38: #{resblock_forward.1} parent=5 // pred_check_branch
      %227 = sbr.rel (%p225) target = $region40
    $region39: #{resblock_forward.1} parent=5 // pred_region
      // Predicated region
      $region41: #{resblock_forward.1} parent=39 // pred_check
        %p228 = pneg %p33
      $region42: #{resblock_forward.1} parent=39 // pred_check_branch
        %230 = sbr.rel (%p228) target = $region44
      $region43: #{resblock_forward.1} parent=39 // pred_region
        %p231 = scmp.lt.s32.totalorder %s13, 1
        %s232 = scalar_select %p231, %s13, 1
        %s233 = smul.addr %s232, 2
        %s234 = smul.addr %s233, 4
        %s235 = scalar_lea.vmem %s0, %s234
      $region44: #{resblock_forward.1} parent=39 // pred_fallthru
        _
    $region40: #{resblock_forward.1} parent=5 // pred_fallthru
      _
    %p236 = scmp.le.s32.totalorder 1, %s13
    %p237 = scmp.lt.s32.totalorder %s13, 3
    %p238 = pnand %p236, %p237
    %p239 = pneg %p238
    // Predicated region
    $region45: #{resblock_forward.1} parent=5 // pred_check
      _
    $region46: #{resblock_forward.1} parent=5 // pred_check_branch
      %241 = sbr.rel (%p238) target = $region48
    $region47: #{resblock_forward.1} parent=5 // pred_region
      %s242 = ssub.s32 %s13, 1
      %p243 = scmp.lt.s32.totalorder %s18, 1
      %s244 = scalar_select %p243, %s18, 1
      %s245 = smul.addr %s244, 2
      %s246 = smul.addr %s245, 4
      %s247 = scalar_lea.vmem %s0, %s246
      %p248 = pneg %p39
      %p249 = pneg %p36
      %p250 = pneg %p60
      %p251 = pneg %p57
      %p252 = pneg %p81
      %p253 = pneg %p78
      %p254 = pneg %p102
      %p255 = pneg %p99
      %p256 = pneg %p123
      %p257 = pneg %p120
      %p258 = pneg %p144
      %p259 = pneg %p141
      %p260 = pneg %p165
      %p261 = pneg %p162
      %p262 = pneg %p191
      %p263 = pneg %p188
      %p264 = scmp.lt.s32.totalorder %s18, 1
      %s265 = scalar_select %p264, %s18, 1
      %s266 = smul.addr %s265, 2
      %s267 = smul.addr %s266, 4
      %s268 = scalar_lea.vmem %s7, %s267
      %p269 = scmp.lt.s32.totalorder %s18, 1
      %s270 = scalar_select %p269, %s18, 1
      %s271 = smul.addr %s270, 2
      %s272 = smul.addr %s271, 4
      %s273 = scalar_lea.vmem %s0, %s272
      %p274 = scmp.lt.s32.totalorder %s18, 1
      %s275 = scalar_select %p274, %s18, 1
      %s276 = smul.addr %s275, 2
      %s277 = smul.addr %s276, 4
      %s278 = scalar_lea.vmem %s7, %s277
      %v279 = vlaneseq
      %v280 = vand.u32 %v279, 127
      %v281 = vadd.s32 %v280, 128
      %vm282 = vcmp.lt.s32.totalorder %v280, 0
      %v283 = vsub.s32 0, %v280
      %v284 = vsel %vm282, %v283, %v280
      %v285 = vshrl.u32 %v284, 4
      %v286 = vand.u32 %v284, 15
      %v287 = vsub.s32 0, %v286
      %v288 = vsel %vm282, %v287, %v286
      %vm289 = vcmp.lt.s32.totalorder %v281, 0
      %v290 = vsub.s32 0, %v281
      %v291 = vsel %vm289, %v290, %v281
      %v292 = vshrl.u32 %v291, 4
      %v293 = vand.u32 %v291, 15
      %v294 = vsub.s32 0, %v293
      %v295 = vsel %vm289, %v294, %v293
      %vm296 = vcmp.ne.s32.totalorder %v288, 0
      %vm297 = vcmp.ne.s32.totalorder %v295, 0
      %vm298 = vcmp.lt.s32.totalorder %v288, 0
      %vm299 = vcmp.lt.s32.totalorder %v295, 0
      %vm300 = vmand %vm298, %vm296
      %vm301 = vmand %vm299, %vm297
      %v302 = vadd.s32 %v288, 16
      %v303 = vadd.s32 %v295, 16
      %v304 = vsel %vm300, %v302, %v288
      %v305 = vsel %vm301, %v303, %v295
      %vm306 = vcmp.ne.s32.totalorder %v304, 0
      %vm307 = vcmp.ne.s32.totalorder %v305, 0
      %v308 = vsel %vm306, 1.0, 0.0
      %v309 = vsel %vm307, 1.0, 0.0
      %vm310 = vcmp.ne.s32.totalorder %v304, 15
      %vm311 = vcmp.ne.s32.totalorder %v305, 15
      %v312 = vsel %vm310, 1.0, 0.0
      %v313 = vsel %vm311, 1.0, 0.0
      %vm314 = vcmask 134144
      %315 = vst.msk [vmem:[#allocation2] sm:$0xf] %vm314, 0.0
      %vm316 = vcmask 273544
      %317 = vst.msk [vmem:[#allocation2 + $0x8] sm:$0xf] %vm316, 0.0
      %318 = vst.msk [vmem:[#allocation3] sm:$0xf] %vm314, 0.0
      %319 = vst.msk [vmem:[#allocation3 + $0x8] sm:$0xf] %vm316, 0.0
      %v320 = vld [vmem:[%s273] sm:$0xff]
      %322 = vrot.lane.b32.xlu0 %v320, 17
      %v323 = vpop.permute.xlu0 %322
      %v324 = vrot.slane %v323, 4
      %vm325 = vcmask 138240
      %v326 = vsel %vm325, %v324, %v323
      %vm329 = vcmask 1043592
      %vm330 = vcmask 1047556
      %vm331 = vmor %vm330, %vm329
      %332 = vst.msk [vmem:[#allocation2] sm:$0xff] %vm331, %v326
      %333 = vst.msk [vmem:[#allocation2 + $0x8] sm:$0xf] %vm314, %v324
      %v334 = vld [vmem:[#allocation2] sm:$0xff]
      %v335 = vld [vmem:[%s1] sm:$0xf]
      %v336 = vld [vmem:[#allocation2 + $0x8] sm:$0xf]
      %s337 = scalar_lea.vmem %s1, 12
      %v338 = vld [vmem:[%s337] sm:$0xf]
      %v341 = vcombine.high %v334, %v334
      %342 = vrot.lane.b32.xlu0 %v334, 112
      %v343 = vpop.permute.xlu0 %342
      %344 = vrot.lane.b32.xlu0 %v341, 112
      %v345 = vpop.permute.xlu0 %344
      %346 = vrot.lane.b32.xlu0 %v336, 112
      %v347 = vpop.permute.xlu0 %346
      %vm348 = vcmask 916480
      %v349 = vsel %vm348, %v343, %v345
      %v350 = vsel %vm348, %v345, %v347
      %vm351 = vcmask 31744
      %v353 = vsel %vm351, %v338, 0
      %vm355 = vcmask 1043456
      %v356 = vsel %vm355, %v349, 0
      %v358 = vsel %vm355, %v350, 0
      %360 = vmatprep.subr.mxu0 0.0
      %361 = vmatpush1.msra.mxu0 0.0
      %362 = vmatprep.subr.mxu0 0.0
      %363 = vmatpush1.msra.mxu0 0.0
      %364 = vmatprep.subr.mxu0 0.0
      %365 = vmatpush1.msra.mxu0 0.0
      %366 = vmatprep.subr.mxu0 0.0
      %367 = vmatpush1.msra.mxu0 0.0
      %368 = vmatprep.subr.mxu0 0.0
      %369 = vmatpush1.msra.mxu0 0.0
      %370 = vmatprep.subr.mxu0 0.0
      %371 = vmatpush1.msra.mxu0 0.0
      %372 = vmatprep.subr.mxu0 0.0
      %373 = vmatpush1.msra.mxu0 0.0
      %374 = vmatprep.subr.mxu0 0.0
      %375 = vmatpush1.msra.mxu0 0.0
      %376 = vmatprep.subr.mxu0 0.0
      %377 = vmatpush1.msra.mxu0 0.0
      %378 = vmatprep.subr.mxu0 0.0
      %379 = vmatpush1.msra.mxu0 0.0
      %380 = vmatprep.subr.mxu0 0.0
      %381 = vmatpush1.msra.mxu0 0.0
      %382 = vmatprep.subr.mxu0 0.0
      %383 = vmatpush1.msra.mxu0 0.0
      %384 = vmatprep.subr.mxu0 0.0
      %385 = vmatpush1.msra.mxu0 0.0
      %386 = vmatprep.subr.mxu0 0.0
      %387 = vmatpush1.msra.mxu0 0.0
      %388 = vmatprep.subr.mxu0 0.0
      %389 = vmatpush1.msra.mxu0 0.0
      %390 = vmatprep.subr.mxu0 %v358
      %391 = vmatpush1.msra.mxu0 %v356
      %392 = vmatprep.subr.mxu0 0.0
      %393 = vmatpush2.msra.mxu0 0.0
      %394 = vmatprep.subr.mxu0 0.0
      %395 = vmatpush2.msra.mxu0 0.0
      %396 = vmatprep.subr.mxu0 0.0
      %397 = vmatpush2.msra.mxu0 0.0
      %398 = vmatprep.subr.mxu0 0.0
      %399 = vmatpush2.msra.mxu0 0.0
      %400 = vmatprep.subr.mxu0 0.0
      %401 = vmatpush2.msra.mxu0 0.0
      %402 = vmatprep.subr.mxu0 0.0
      %403 = vmatpush2.msra.mxu0 0.0
      %404 = vmatprep.subr.mxu0 0.0
      %405 = vmatpush2.msra.mxu0 0.0
      %406 = vmatprep.subr.mxu0 0.0
      %407 = vmatpush2.msra.mxu0 0.0
      %408 = vmatprep.subr.mxu0 0.0
      %409 = vmatpush2.msra.mxu0 0.0
      %410 = vmatprep.subr.mxu0 0.0
      %411 = vmatpush2.msra.mxu0 0.0
      %412 = vmatprep.subr.mxu0 0.0
      %413 = vmatpush2.msra.mxu0 0.0
      %414 = vmatprep.subr.mxu0 0.0
      %415 = vmatpush2.msra.mxu0 0.0
      %416 = vmatprep.subr.mxu0 0.0
      %417 = vmatpush2.msra.mxu0 0.0
      %418 = vmatprep.subr.mxu0 0.0
      %419 = vmatpush2.msra.mxu0 0.0
      %420 = vmatprep.subr.mxu0 0.0
      %421 = vmatpush2.msra.mxu0 0.0
      %422 = vmatprep.subr.mxu0 0.0
      %423 = vmatpush2.msra.mxu0 0.0
      %424 = vmatprep.mubr.f32.mxu0 0.0
      %425 = vmatmul.mubr.f32.gmra.mxu0 %v353
      %v426 = vpop.f32.mrf.mxu0
      %v427 = vadd.f32 0.0, %v426
      %v428 = vpop.f32.mrf.mxu0
      %v429 = vadd.f32 0.0, %v428
      %430 = vdwg.mxu0
      %v432 = vsel %vm351, %v335, 0
      %v434 = vsel %vm355, %v334, 0
      %v436 = vsel %vm355, %v341, 0
      %438 = vmatprep.subr.mxu0 0.0
      %439 = vmatpush1.msra.mxu0 0.0
      %440 = vmatprep.subr.mxu0 0.0
      %441 = vmatpush1.msra.mxu0 0.0
      %442 = vmatprep.subr.mxu0 0.0
      %443 = vmatpush1.msra.mxu0 0.0
      %444 = vmatprep.subr.mxu0 0.0
      %445 = vmatpush1.msra.mxu0 0.0
      %446 = vmatprep.subr.mxu0 0.0
      %447 = vmatpush1.msra.mxu0 0.0
      %448 = vmatprep.subr.mxu0 0.0
      %449 = vmatpush1.msra.mxu0 0.0
      %450 = vmatprep.subr.mxu0 0.0
      %451 = vmatpush1.msra.mxu0 0.0
      %452 = vmatprep.subr.mxu0 0.0
      %453 = vmatpush1.msra.mxu0 0.0
      %454 = vmatprep.subr.mxu0 0.0
      %455 = vmatpush1.msra.mxu0 0.0
      %456 = vmatprep.subr.mxu0 0.0
      %457 = vmatpush1.msra.mxu0 0.0
      %458 = vmatprep.subr.mxu0 0.0
      %459 = vmatpush1.msra.mxu0 0.0
      %460 = vmatprep.subr.mxu0 0.0
      %461 = vmatpush1.msra.mxu0 0.0
      %462 = vmatprep.subr.mxu0 0.0
      %463 = vmatpush1.msra.mxu0 0.0
      %464 = vmatprep.subr.mxu0 0.0
      %465 = vmatpush1.msra.mxu0 0.0
      %466 = vmatprep.subr.mxu0 0.0
      %467 = vmatpush1.msra.mxu0 0.0
      %468 = vmatprep.subr.mxu0 %v436
      %469 = vmatpush1.msra.mxu0 %v434
      %470 = vmatprep.subr.mxu0 0.0
      %471 = vmatpush2.msra.mxu0 0.0
      %472 = vmatprep.subr.mxu0 0.0
      %473 = vmatpush2.msra.mxu0 0.0
      %474 = vmatprep.subr.mxu0 0.0
      %475 = vmatpush2.msra.mxu0 0.0
      %476 = vmatprep.subr.mxu0 0.0
      %477 = vmatpush2.msra.mxu0 0.0
      %478 = vmatprep.subr.mxu0 0.0
      %479 = vmatpush2.msra.mxu0 0.0
      %480 = vmatprep.subr.mxu0 0.0
      %481 = vmatpush2.msra.mxu0 0.0
      %482 = vmatprep.subr.mxu0 0.0
      %483 = vmatpush2.msra.mxu0 0.0
      %484 = vmatprep.subr.mxu0 0.0
      %485 = vmatpush2.msra.mxu0 0.0
      %486 = vmatprep.subr.mxu0 0.0
      %487 = vmatpush2.msra.mxu0 0.0
      %488 = vmatprep.subr.mxu0 0.0
      %489 = vmatpush2.msra.mxu0 0.0
      %490 = vmatprep.subr.mxu0 0.0
      %491 = vmatpush2.msra.mxu0 0.0
      %492 = vmatprep.subr.mxu0 0.0
      %493 = vmatpush2.msra.mxu0 0.0
      %494 = vmatprep.subr.mxu0 0.0
      %495 = vmatpush2.msra.mxu0 0.0
      %496 = vmatprep.subr.mxu0 0.0
      %497 = vmatpush2.msra.mxu0 0.0
      %498 = vmatprep.subr.mxu0 0.0
      %499 = vmatpush2.msra.mxu0 0.0
      %500 = vmatprep.subr.mxu0 0.0
      %501 = vmatpush2.msra.mxu0 0.0
      %502 = vmatprep.mubr.f32.mxu0 0.0
      %503 = vmatmul.mubr.f32.gmra.mxu0 %v432
      %v504 = vpop.f32.mrf.mxu0
      %v505 = vadd.f32 %v427, %v504
      %v506 = vpop.f32.mrf.mxu0
      %v507 = vadd.f32 %v429, %v506
      %508 = vdwg.mxu0
      %v509 = vld [vmem:[#allocation2] sm:$0xff]
      %v510 = vld [vmem:[#allocation2 + $0x8] sm:$0xf]
      %s511 = scalar_lea.vmem %s1, 24
      %v512 = vld [vmem:[%s511] sm:$0xf]
      %v515 = vcombine.high %v509, %v509
      %516 = vrot.lane.b32.xlu0 %v509, 96
      %v517 = vpop.permute.xlu0 %516
      %518 = vrot.lane.b32.xlu0 %v515, 96
      %v519 = vpop.permute.xlu0 %518
      %520 = vrot.lane.b32.xlu0 %v510, 96
      %v521 = vpop.permute.xlu0 %520
      %vm522 = vcmask 785408
      %v523 = vsel %vm522, %v517, %v519
      %v524 = vsel %vm522, %v519, %v521
      %v526 = vsel %vm351, %v512, 0
      %v528 = vsel %vm355, %v523, 0
      %v530 = vsel %vm355, %v524, 0
      %532 = vmatprep.subr.mxu0 0.0
      %533 = vmatpush1.msra.mxu0 0.0
      %534 = vmatprep.subr.mxu0 0.0
      %535 = vmatpush1.msra.mxu0 0.0
      %536 = vmatprep.subr.mxu0 0.0
      %537 = vmatpush1.msra.mxu0 0.0
      %538 = vmatprep.subr.mxu0 0.0
      %539 = vmatpush1.msra.mxu0 0.0
      %540 = vmatprep.subr.mxu0 0.0
      %541 = vmatpush1.msra.mxu0 0.0
      %542 = vmatprep.subr.mxu0 0.0
      %543 = vmatpush1.msra.mxu0 0.0
      %544 = vmatprep.subr.mxu0 0.0
      %545 = vmatpush1.msra.mxu0 0.0
      %546 = vmatprep.subr.mxu0 0.0
      %547 = vmatpush1.msra.mxu0 0.0
      %548 = vmatprep.subr.mxu0 0.0
      %549 = vmatpush1.msra.mxu0 0.0
      %550 = vmatprep.subr.mxu0 0.0
      %551 = vmatpush1.msra.mxu0 0.0
      %552 = vmatprep.subr.mxu0 0.0
      %553 = vmatpush1.msra.mxu0 0.0
      %554 = vmatprep.subr.mxu0 0.0
      %555 = vmatpush1.msra.mxu0 0.0
      %556 = vmatprep.subr.mxu0 0.0
      %557 = vmatpush1.msra.mxu0 0.0
      %558 = vmatprep.subr.mxu0 0.0
      %559 = vmatpush1.msra.mxu0 0.0
      %560 = vmatprep.subr.mxu0 0.0
      %561 = vmatpush1.msra.mxu0 0.0
      %562 = vmatprep.subr.mxu0 %v530
      %563 = vmatpush1.msra.mxu0 %v528
      %564 = vmatprep.subr.mxu0 0.0
      %565 = vmatpush2.msra.mxu0 0.0
      %566 = vmatprep.subr.mxu0 0.0
      %567 = vmatpush2.msra.mxu0 0.0
      %568 = vmatprep.subr.mxu0 0.0
      %569 = vmatpush2.msra.mxu0 0.0
      %570 = vmatprep.subr.mxu0 0.0
      %571 = vmatpush2.msra.mxu0 0.0
      %572 = vmatprep.subr.mxu0 0.0
      %573 = vmatpush2.msra.mxu0 0.0
      %574 = vmatprep.subr.mxu0 0.0
      %575 = vmatpush2.msra.mxu0 0.0
      %576 = vmatprep.subr.mxu0 0.0
      %577 = vmatpush2.msra.mxu0 0.0
      %578 = vmatprep.subr.mxu0 0.0
      %579 = vmatpush2.msra.mxu0 0.0
      %580 = vmatprep.subr.mxu0 0.0
      %581 = vmatpush2.msra.mxu0 0.0
      %582 = vmatprep.subr.mxu0 0.0
      %583 = vmatpush2.msra.mxu0 0.0
      %584 = vmatprep.subr.mxu0 0.0
      %585 = vmatpush2.msra.mxu0 0.0
      %586 = vmatprep.subr.mxu0 0.0
      %587 = vmatpush2.msra.mxu0 0.0
      %588 = vmatprep.subr.mxu0 0.0
      %589 = vmatpush2.msra.mxu0 0.0
      %590 = vmatprep.subr.mxu0 0.0
      %591 = vmatpush2.msra.mxu0 0.0
      %592 = vmatprep.subr.mxu0 0.0
      %593 = vmatpush2.msra.mxu0 0.0
      %594 = vmatprep.subr.mxu0 0.0
      %595 = vmatpush2.msra.mxu0 0.0
      %596 = vmatprep.mubr.f32.mxu0 0.0
      %597 = vmatmul.mubr.f32.gmra.mxu0 %v526
      %v598 = vpop.f32.mrf.mxu0
      %v599 = vadd.f32 0.0, %v598
      %v600 = vpop.f32.mrf.mxu0
      %v601 = vadd.f32 0.0, %v600
      %602 = vdwg.mxu0
      %v603 = vadd.f32 %v505, %v599
      %v604 = vadd.f32 %v507, %v601
      %v605 = vld [vmem:[#allocation2] sm:$0xff]
      %v606 = vld [vmem:[#allocation2 + $0x8] sm:$0xf]
      %s607 = scalar_lea.vmem %s1, 4
      %v608 = vld [vmem:[%s607] sm:$0xf]
      %s609 = scalar_lea.vmem %s1, 16
      %v610 = vld [vmem:[%s609] sm:$0xf]
      %v613 = vcombine.high %v605, %v605
      %614 = vrot.lane.b32.xlu0 %v605, 111
      %v615 = vpop.permute.xlu0 %614
      %616 = vrot.lane.b32.xlu0 %v613, 111
      %v617 = vpop.permute.xlu0 %616
      %618 = vrot.lane.b32.xlu0 %v606, 111
      %v619 = vpop.permute.xlu0 %618
      %vm620 = vcmask 908288
      %v621 = vsel %vm620, %v615, %v617
      %v622 = vsel %vm620, %v617, %v619
      %v624 = vsel %vm351, %v610, 0
      %v626 = vsel %vm355, %v621, 0
      %v628 = vsel %vm355, %v622, 0
      %630 = vmatprep.subr.mxu0 0.0
      %631 = vmatpush1.msra.mxu0 0.0
      %632 = vmatprep.subr.mxu0 0.0
      %633 = vmatpush1.msra.mxu0 0.0
      %634 = vmatprep.subr.mxu0 0.0
      %635 = vmatpush1.msra.mxu0 0.0
      %636 = vmatprep.subr.mxu0 0.0
      %637 = vmatpush1.msra.mxu0 0.0
      %638 = vmatprep.subr.mxu0 0.0
      %639 = vmatpush1.msra.mxu0 0.0
      %640 = vmatprep.subr.mxu0 0.0
      %641 = vmatpush1.msra.mxu0 0.0
      %642 = vmatprep.subr.mxu0 0.0
      %643 = vmatpush1.msra.mxu0 0.0
      %644 = vmatprep.subr.mxu0 0.0
      %645 = vmatpush1.msra.mxu0 0.0
      %646 = vmatprep.subr.mxu0 0.0
      %647 = vmatpush1.msra.mxu0 0.0
      %648 = vmatprep.subr.mxu0 0.0
      %649 = vmatpush1.msra.mxu0 0.0
      %650 = vmatprep.subr.mxu0 0.0
      %651 = vmatpush1.msra.mxu0 0.0
      %652 = vmatprep.subr.mxu0 0.0
      %653 = vmatpush1.msra.mxu0 0.0
      %654 = vmatprep.subr.mxu0 0.0
      %655 = vmatpush1.msra.mxu0 0.0
      %656 = vmatprep.subr.mxu0 0.0
      %657 = vmatpush1.msra.mxu0 0.0
      %658 = vmatprep.subr.mxu0 0.0
      %659 = vmatpush1.msra.mxu0 0.0
      %660 = vmatprep.subr.mxu0 %v628
      %661 = vmatpush1.msra.mxu0 %v626
      %662 = vmatprep.subr.mxu0 0.0
      %663 = vmatpush2.msra.mxu0 0.0
      %664 = vmatprep.subr.mxu0 0.0
      %665 = vmatpush2.msra.mxu0 0.0
      %666 = vmatprep.subr.mxu0 0.0
      %667 = vmatpush2.msra.mxu0 0.0
      %668 = vmatprep.subr.mxu0 0.0
      %669 = vmatpush2.msra.mxu0 0.0
      %670 = vmatprep.subr.mxu0 0.0
      %671 = vmatpush2.msra.mxu0 0.0
      %672 = vmatprep.subr.mxu0 0.0
      %673 = vmatpush2.msra.mxu0 0.0
      %674 = vmatprep.subr.mxu0 0.0
      %675 = vmatpush2.msra.mxu0 0.0
      %676 = vmatprep.subr.mxu0 0.0
      %677 = vmatpush2.msra.mxu0 0.0
      %678 = vmatprep.subr.mxu0 0.0
      %679 = vmatpush2.msra.mxu0 0.0
      %680 = vmatprep.subr.mxu0 0.0
      %681 = vmatpush2.msra.mxu0 0.0
      %682 = vmatprep.subr.mxu0 0.0
      %683 = vmatpush2.msra.mxu0 0.0
      %684 = vmatprep.subr.mxu0 0.0
      %685 = vmatpush2.msra.mxu0 0.0
      %686 = vmatprep.subr.mxu0 0.0
      %687 = vmatpush2.msra.mxu0 0.0
      %688 = vmatprep.subr.mxu0 0.0
      %689 = vmatpush2.msra.mxu0 0.0
      %690 = vmatprep.subr.mxu0 0.0
      %691 = vmatpush2.msra.mxu0 0.0
      %692 = vmatprep.subr.mxu0 0.0
      %693 = vmatpush2.msra.mxu0 0.0
      %694 = vmatprep.mubr.f32.mxu0 0.0
      %695 = vmatmul.mubr.f32.gmra.mxu0 %v624
      %v696 = vpop.f32.mrf.mxu0
      %v697 = vadd.f32 0.0, %v696
      %v698 = vpop.f32.mrf.mxu0
      %v699 = vadd.f32 0.0, %v698
      %700 = vdwg.mxu0
      %701 = vrot.lane.b32.xlu0 %v605, 127
      %v702 = vpop.permute.xlu0 %701
      %703 = vrot.lane.b32.xlu0 %v613, 127
      %v704 = vpop.permute.xlu0 %703
      %705 = vrot.lane.b32.xlu0 %v606, 127
      %v706 = vpop.permute.xlu0 %705
      %vm707 = vcmask 1039360
      %v708 = vsel %vm707, %v702, %v704
      %v709 = vsel %vm707, %v704, %v706
      %v711 = vsel %vm351, %v608, 0
      %v713 = vsel %vm355, %v708, 0
      %v715 = vsel %vm355, %v709, 0
      %717 = vmatprep.subr.mxu0 0.0
      %718 = vmatpush1.msra.mxu0 0.0
      %719 = vmatprep.subr.mxu0 0.0
      %720 = vmatpush1.msra.mxu0 0.0
      %721 = vmatprep.subr.mxu0 0.0
      %722 = vmatpush1.msra.mxu0 0.0
      %723 = vmatprep.subr.mxu0 0.0
      %724 = vmatpush1.msra.mxu0 0.0
      %725 = vmatprep.subr.mxu0 0.0
      %726 = vmatpush1.msra.mxu0 0.0
      %727 = vmatprep.subr.mxu0 0.0
      %728 = vmatpush1.msra.mxu0 0.0
      %729 = vmatprep.subr.mxu0 0.0
      %730 = vmatpush1.msra.mxu0 0.0
      %731 = vmatprep.subr.mxu0 0.0
      %732 = vmatpush1.msra.mxu0 0.0
      %733 = vmatprep.subr.mxu0 0.0
      %734 = vmatpush1.msra.mxu0 0.0
      %735 = vmatprep.subr.mxu0 0.0
      %736 = vmatpush1.msra.mxu0 0.0
      %737 = vmatprep.subr.mxu0 0.0
      %738 = vmatpush1.msra.mxu0 0.0
      %739 = vmatprep.subr.mxu0 0.0
      %740 = vmatpush1.msra.mxu0 0.0
      %741 = vmatprep.subr.mxu0 0.0
      %742 = vmatpush1.msra.mxu0 0.0
      %743 = vmatprep.subr.mxu0 0.0
      %744 = vmatpush1.msra.mxu0 0.0
      %745 = vmatprep.subr.mxu0 0.0
      %746 = vmatpush1.msra.mxu0 0.0
      %747 = vmatprep.subr.mxu0 %v715
      %748 = vmatpush1.msra.mxu0 %v713
      %749 = vmatprep.subr.mxu0 0.0
      %750 = vmatpush2.msra.mxu0 0.0
      %751 = vmatprep.subr.mxu0 0.0
      %752 = vmatpush2.msra.mxu0 0.0
      %753 = vmatprep.subr.mxu0 0.0
      %754 = vmatpush2.msra.mxu0 0.0
      %755 = vmatprep.subr.mxu0 0.0
      %756 = vmatpush2.msra.mxu0 0.0
      %757 = vmatprep.subr.mxu0 0.0
      %758 = vmatpush2.msra.mxu0 0.0
      %759 = vmatprep.subr.mxu0 0.0
      %760 = vmatpush2.msra.mxu0 0.0
      %761 = vmatprep.subr.mxu0 0.0
      %762 = vmatpush2.msra.mxu0 0.0
      %763 = vmatprep.subr.mxu0 0.0
      %764 = vmatpush2.msra.mxu0 0.0
      %765 = vmatprep.subr.mxu0 0.0
      %766 = vmatpush2.msra.mxu0 0.0
      %767 = vmatprep.subr.mxu0 0.0
      %768 = vmatpush2.msra.mxu0 0.0
      %769 = vmatprep.subr.mxu0 0.0
      %770 = vmatpush2.msra.mxu0 0.0
      %771 = vmatprep.subr.mxu0 0.0
      %772 = vmatpush2.msra.mxu0 0.0
      %773 = vmatprep.subr.mxu0 0.0
      %774 = vmatpush2.msra.mxu0 0.0
      %775 = vmatprep.subr.mxu0 0.0
      %776 = vmatpush2.msra.mxu0 0.0
      %777 = vmatprep.subr.mxu0 0.0
      %778 = vmatpush2.msra.mxu0 0.0
      %779 = vmatprep.subr.mxu0 0.0
      %780 = vmatpush2.msra.mxu0 0.0
      %781 = vmatprep.mubr.f32.mxu0 0.0
      %782 = vmatmul.mubr.f32.gmra.mxu0 %v711
      %v783 = vpop.f32.mrf.mxu0
      %v784 = vadd.f32 %v697, %v783
      %v785 = vpop.f32.mrf.mxu0
      %v786 = vadd.f32 %v699, %v785
      %787 = vdwg.mxu0
      %v788 = vld [vmem:[#allocation2] sm:$0xff]
      %v789 = vld [vmem:[#allocation2 + $0x8] sm:$0xf]
      %s790 = scalar_lea.vmem %s1, 28
      %v791 = vld [vmem:[%s790] sm:$0xf]
      %v794 = vcombine.high %v788, %v788
      %795 = vrot.lane.b32.xlu0 %v788, 95
      %v796 = vpop.permute.xlu0 %795
      %797 = vrot.lane.b32.xlu0 %v794, 95
      %v798 = vpop.permute.xlu0 %797
      %799 = vrot.lane.b32.xlu0 %v789, 95
      %v800 = vpop.permute.xlu0 %799
      %vm801 = vcmask 777216
      %v802 = vsel %vm801, %v796, %v798
      %v803 = vsel %vm801, %v798, %v800
      %v805 = vsel %vm351, %v791, 0
      %v807 = vsel %vm355, %v802, 0
      %v809 = vsel %vm355, %v803, 0
      %811 = vmatprep.subr.mxu0 0.0
      %812 = vmatpush1.msra.mxu0 0.0
      %813 = vmatprep.subr.mxu0 0.0
      %814 = vmatpush1.msra.mxu0 0.0
      %815 = vmatprep.subr.mxu0 0.0
      %816 = vmatpush1.msra.mxu0 0.0
      %817 = vmatprep.subr.mxu0 0.0
      %818 = vmatpush1.msra.mxu0 0.0
      %819 = vmatprep.subr.mxu0 0.0
      %820 = vmatpush1.msra.mxu0 0.0
      %821 = vmatprep.subr.mxu0 0.0
      %822 = vmatpush1.msra.mxu0 0.0
      %823 = vmatprep.subr.mxu0 0.0
      %824 = vmatpush1.msra.mxu0 0.0
      %825 = vmatprep.subr.mxu0 0.0
      %826 = vmatpush1.msra.mxu0 0.0
      %827 = vmatprep.subr.mxu0 0.0
      %828 = vmatpush1.msra.mxu0 0.0
      %829 = vmatprep.subr.mxu0 0.0
      %830 = vmatpush1.msra.mxu0 0.0
      %831 = vmatprep.subr.mxu0 0.0
      %832 = vmatpush1.msra.mxu0 0.0
      %833 = vmatprep.subr.mxu0 0.0
      %834 = vmatpush1.msra.mxu0 0.0
      %835 = vmatprep.subr.mxu0 0.0
      %836 = vmatpush1.msra.mxu0 0.0
      %837 = vmatprep.subr.mxu0 0.0
      %838 = vmatpush1.msra.mxu0 0.0
      %839 = vmatprep.subr.mxu0 0.0
      %840 = vmatpush1.msra.mxu0 0.0
      %841 = vmatprep.subr.mxu0 %v809
      %842 = vmatpush1.msra.mxu0 %v807
      %843 = vmatprep.subr.mxu0 0.0
      %844 = vmatpush2.msra.mxu0 0.0
      %845 = vmatprep.subr.mxu0 0.0
      %846 = vmatpush2.msra.mxu0 0.0
      %847 = vmatprep.subr.mxu0 0.0
      %848 = vmatpush2.msra.mxu0 0.0
      %849 = vmatprep.subr.mxu0 0.0
      %850 = vmatpush2.msra.mxu0 0.0
      %851 = vmatprep.subr.mxu0 0.0
      %852 = vmatpush2.msra.mxu0 0.0
      %853 = vmatprep.subr.mxu0 0.0
      %854 = vmatpush2.msra.mxu0 0.0
      %855 = vmatprep.subr.mxu0 0.0
      %856 = vmatpush2.msra.mxu0 0.0
      %857 = vmatprep.subr.mxu0 0.0
      %858 = vmatpush2.msra.mxu0 0.0
      %859 = vmatprep.subr.mxu0 0.0
      %860 = vmatpush2.msra.mxu0 0.0
      %861 = vmatprep.subr.mxu0 0.0
      %862 = vmatpush2.msra.mxu0 0.0
      %863 = vmatprep.subr.mxu0 0.0
      %864 = vmatpush2.msra.mxu0 0.0
      %865 = vmatprep.subr.mxu0 0.0
      %866 = vmatpush2.msra.mxu0 0.0
      %867 = vmatprep.subr.mxu0 0.0
      %868 = vmatpush2.msra.mxu0 0.0
      %869 = vmatprep.subr.mxu0 0.0
      %870 = vmatpush2.msra.mxu0 0.0
      %871 = vmatprep.subr.mxu0 0.0
      %872 = vmatpush2.msra.mxu0 0.0
      %873 = vmatprep.subr.mxu0 0.0
      %874 = vmatpush2.msra.mxu0 0.0
      %875 = vmatprep.mubr.f32.mxu0 0.0
      %876 = vmatmul.mubr.f32.gmra.mxu0 %v805
      %v877 = vpop.f32.mrf.mxu0
      %v878 = vadd.f32 0.0, %v877
      %v879 = vpop.f32.mrf.mxu0
      %v880 = vadd.f32 0.0, %v879
      %881 = vdwg.mxu0
      %v882 = vadd.f32 %v784, %v878
      %v883 = vadd.f32 %v786, %v880
      %v884 = vld [vmem:[#allocation2] sm:$0xff]
      %v885 = vld [vmem:[#allocation2 + $0x8] sm:$0xf]
      %s886 = scalar_lea.vmem %s1, 8
      %v887 = vld [vmem:[%s886] sm:$0xf]
      %s888 = scalar_lea.vmem %s1, 20
      %v889 = vld [vmem:[%s888] sm:$0xf]
      %v892 = vcombine.high %v884, %v884
      %893 = vrot.lane.b32.xlu0 %v884, 110
      %v894 = vpop.permute.xlu0 %893
      %895 = vrot.lane.b32.xlu0 %v892, 110
      %v896 = vpop.permute.xlu0 %895
      %897 = vrot.lane.b32.xlu0 %v885, 110
      %v898 = vpop.permute.xlu0 %897
      %vm899 = vcmask 900096
      %v900 = vsel %vm899, %v894, %v896
      %v901 = vsel %vm899, %v896, %v898
      %v903 = vsel %vm351, %v889, 0
      %v905 = vsel %vm355, %v900, 0
      %v907 = vsel %vm355, %v901, 0
      %909 = vmatprep.subr.mxu0 0.0
      %910 = vmatpush1.msra.mxu0 0.0
      %911 = vmatprep.subr.mxu0 0.0
      %912 = vmatpush1.msra.mxu0 0.0
      %913 = vmatprep.subr.mxu0 0.0
      %914 = vmatpush1.msra.mxu0 0.0
      %915 = vmatprep.subr.mxu0 0.0
      %916 = vmatpush1.msra.mxu0 0.0
      %917 = vmatprep.subr.mxu0 0.0
      %918 = vmatpush1.msra.mxu0 0.0
      %919 = vmatprep.subr.mxu0 0.0
      %920 = vmatpush1.msra.mxu0 0.0
      %921 = vmatprep.subr.mxu0 0.0
      %922 = vmatpush1.msra.mxu0 0.0
      %923 = vmatprep.subr.mxu0 0.0
      %924 = vmatpush1.msra.mxu0 0.0
      %925 = vmatprep.subr.mxu0 0.0
      %926 = vmatpush1.msra.mxu0 0.0
      %927 = vmatprep.subr.mxu0 0.0
      %928 = vmatpush1.msra.mxu0 0.0
      %929 = vmatprep.subr.mxu0 0.0
      %930 = vmatpush1.msra.mxu0 0.0
      %931 = vmatprep.subr.mxu0 0.0
      %932 = vmatpush1.msra.mxu0 0.0
      %933 = vmatprep.subr.mxu0 0.0
      %934 = vmatpush1.msra.mxu0 0.0
      %935 = vmatprep.subr.mxu0 0.0
      %936 = vmatpush1.msra.mxu0 0.0
      %937 = vmatprep.subr.mxu0 0.0
      %938 = vmatpush1.msra.mxu0 0.0
      %939 = vmatprep.subr.mxu0 %v907
      %940 = vmatpush1.msra.mxu0 %v905
      %941 = vmatprep.subr.mxu0 0.0
      %942 = vmatpush2.msra.mxu0 0.0
      %943 = vmatprep.subr.mxu0 0.0
      %944 = vmatpush2.msra.mxu0 0.0
      %945 = vmatprep.subr.mxu0 0.0
      %946 = vmatpush2.msra.mxu0 0.0
      %947 = vmatprep.subr.mxu0 0.0
      %948 = vmatpush2.msra.mxu0 0.0
      %949 = vmatprep.subr.mxu0 0.0
      %950 = vmatpush2.msra.mxu0 0.0
      %951 = vmatprep.subr.mxu0 0.0
      %952 = vmatpush2.msra.mxu0 0.0
      %953 = vmatprep.subr.mxu0 0.0
      %954 = vmatpush2.msra.mxu0 0.0
      %955 = vmatprep.subr.mxu0 0.0
      %956 = vmatpush2.msra.mxu0 0.0
      %957 = vmatprep.subr.mxu0 0.0
      %958 = vmatpush2.msra.mxu0 0.0
      %959 = vmatprep.subr.mxu0 0.0
      %960 = vmatpush2.msra.mxu0 0.0
      %961 = vmatprep.subr.mxu0 0.0
      %962 = vmatpush2.msra.mxu0 0.0
      %963 = vmatprep.subr.mxu0 0.0
      %964 = vmatpush2.msra.mxu0 0.0
      %965 = vmatprep.subr.mxu0 0.0
      %966 = vmatpush2.msra.mxu0 0.0
      %967 = vmatprep.subr.mxu0 0.0
      %968 = vmatpush2.msra.mxu0 0.0
      %969 = vmatprep.subr.mxu0 0.0
      %970 = vmatpush2.msra.mxu0 0.0
      %971 = vmatprep.subr.mxu0 0.0
      %972 = vmatpush2.msra.mxu0 0.0
      %973 = vmatprep.mubr.f32.mxu0 0.0
      %974 = vmatmul.mubr.f32.gmra.mxu0 %v903
      %v975 = vpop.f32.mrf.mxu0
      %v976 = vadd.f32 0.0, %v975
      %v977 = vpop.f32.mrf.mxu0
      %v978 = vadd.f32 0.0, %v977
      %979 = vdwg.mxu0
      %980 = vrot.lane.b32.xlu0 %v884, 126
      %v981 = vpop.permute.xlu0 %980
      %982 = vrot.lane.b32.xlu0 %v892, 126
      %v983 = vpop.permute.xlu0 %982
      %984 = vrot.lane.b32.xlu0 %v885, 126
      %v985 = vpop.permute.xlu0 %984
      %vm986 = vcmask 1031168
      %v987 = vsel %vm986, %v981, %v983
      %v988 = vsel %vm986, %v983, %v985
      %v990 = vsel %vm351, %v887, 0
      %v992 = vsel %vm355, %v987, 0
      %v994 = vsel %vm355, %v988, 0
      %996 = vmatprep.subr.mxu0 0.0
      %997 = vmatpush1.msra.mxu0 0.0
      %998 = vmatprep.subr.mxu0 0.0
      %999 = vmatpush1.msra.mxu0 0.0
      %1000 = vmatprep.subr.mxu0 0.0
      %1001 = vmatpush1.msra.mxu0 0.0
      %1002 = vmatprep.subr.mxu0 0.0
      %1003 = vmatpush1.msra.mxu0 0.0
      %1004 = vmatprep.subr.mxu0 0.0
      %1005 = vmatpush1.msra.mxu0 0.0
      %1006 = vmatprep.subr.mxu0 0.0
      %1007 = vmatpush1.msra.mxu0 0.0
      %1008 = vmatprep.subr.mxu0 0.0
      %1009 = vmatpush1.msra.mxu0 0.0
      %1010 = vmatprep.subr.mxu0 0.0
      %1011 = vmatpush1.msra.mxu0 0.0
      %1012 = vmatprep.subr.mxu0 0.0
      %1013 = vmatpush1.msra.mxu0 0.0
      %1014 = vmatprep.subr.mxu0 0.0
      %1015 = vmatpush1.msra.mxu0 0.0
      %1016 = vmatprep.subr.mxu0 0.0
      %1017 = vmatpush1.msra.mxu0 0.0
      %1018 = vmatprep.subr.mxu0 0.0
      %1019 = vmatpush1.msra.mxu0 0.0
      %1020 = vmatprep.subr.mxu0 0.0
      %1021 = vmatpush1.msra.mxu0 0.0
      %1022 = vmatprep.subr.mxu0 0.0
      %1023 = vmatpush1.msra.mxu0 0.0
      %1024 = vmatprep.subr.mxu0 0.0
      %1025 = vmatpush1.msra.mxu0 0.0
      %1026 = vmatprep.subr.mxu0 %v994
      %1027 = vmatpush1.msra.mxu0 %v992
      %1028 = vmatprep.subr.mxu0 0.0
      %1029 = vmatpush2.msra.mxu0 0.0
      %1030 = vmatprep.subr.mxu0 0.0
      %1031 = vmatpush2.msra.mxu0 0.0
      %1032 = vmatprep.subr.mxu0 0.0
      %1033 = vmatpush2.msra.mxu0 0.0
      %1034 = vmatprep.subr.mxu0 0.0
      %1035 = vmatpush2.msra.mxu0 0.0
      %1036 = vmatprep.subr.mxu0 0.0
      %1037 = vmatpush2.msra.mxu0 0.0
      %1038 = vmatprep.subr.mxu0 0.0
      %1039 = vmatpush2.msra.mxu0 0.0
      %1040 = vmatprep.subr.mxu0 0.0
      %1041 = vmatpush2.msra.mxu0 0.0
      %1042 = vmatprep.subr.mxu0 0.0
      %1043 = vmatpush2.msra.mxu0 0.0
      %1044 = vmatprep.subr.mxu0 0.0
      %1045 = vmatpush2.msra.mxu0 0.0
      %1046 = vmatprep.subr.mxu0 0.0
      %1047 = vmatpush2.msra.mxu0 0.0
      %1048 = vmatprep.subr.mxu0 0.0
      %1049 = vmatpush2.msra.mxu0 0.0
      %1050 = vmatprep.subr.mxu0 0.0
      %1051 = vmatpush2.msra.mxu0 0.0
      %1052 = vmatprep.subr.mxu0 0.0
      %1053 = vmatpush2.msra.mxu0 0.0
      %1054 = vmatprep.subr.mxu0 0.0
      %1055 = vmatpush2.msra.mxu0 0.0
      %1056 = vmatprep.subr.mxu0 0.0
      %1057 = vmatpush2.msra.mxu0 0.0
      %1058 = vmatprep.subr.mxu0 0.0
      %1059 = vmatpush2.msra.mxu0 0.0
      %1060 = vmatprep.mubr.f32.mxu0 0.0
      %1061 = vmatmul.mubr.f32.gmra.mxu0 %v990
      %v1062 = vpop.f32.mrf.mxu0
      %v1063 = vadd.f32 %v976, %v1062
      %v1064 = vpop.f32.mrf.mxu0
      %v1065 = vadd.f32 %v978, %v1064
      %1066 = vdwg.mxu0
      %v1067 = vld [vmem:[#allocation2] sm:$0xff]
      %v1068 = vld [vmem:[#allocation2 + $0x8] sm:$0xf]
      %s1069 = scalar_lea.vmem %s1, 32
      %v1070 = vld [vmem:[%s1069] sm:$0xf]
      %v1073 = vcombine.high %v1067, %v1067
      %1074 = vrot.lane.b32.xlu0 %v1067, 94
      %v1075 = vpop.permute.xlu0 %1074
      %1076 = vrot.lane.b32.xlu0 %v1073, 94
      %v1077 = vpop.permute.xlu0 %1076
      %1078 = vrot.lane.b32.xlu0 %v1068, 94
      %v1079 = vpop.permute.xlu0 %1078
      %vm1080 = vcmask 769024
      %v1081 = vsel %vm1080, %v1075, %v1077
      %v1082 = vsel %vm1080, %v1077, %v1079
      %v1084 = vsel %vm351, %v1070, 0
      %v1086 = vsel %vm355, %v1081, 0
      %v1088 = vsel %vm355, %v1082, 0
      %1090 = vmatprep.subr.mxu0 0.0
      %1091 = vmatpush1.msra.mxu0 0.0
      %1092 = vmatprep.subr.mxu0 0.0
      %1093 = vmatpush1.msra.mxu0 0.0
      %1094 = vmatprep.subr.mxu0 0.0
      %1095 = vmatpush1.msra.mxu0 0.0
      %1096 = vmatprep.subr.mxu0 0.0
      %1097 = vmatpush1.msra.mxu0 0.0
      %1098 = vmatprep.subr.mxu0 0.0
      %1099 = vmatpush1.msra.mxu0 0.0
      %1100 = vmatprep.subr.mxu0 0.0
      %1101 = vmatpush1.msra.mxu0 0.0
      %1102 = vmatprep.subr.mxu0 0.0
      %1103 = vmatpush1.msra.mxu0 0.0
      %1104 = vmatprep.subr.mxu0 0.0
      %1105 = vmatpush1.msra.mxu0 0.0
      %1106 = vmatprep.subr.mxu0 0.0
      %1107 = vmatpush1.msra.mxu0 0.0
      %1108 = vmatprep.subr.mxu0 0.0
      %1109 = vmatpush1.msra.mxu0 0.0
      %1110 = vmatprep.subr.mxu0 0.0
      %1111 = vmatpush1.msra.mxu0 0.0
      %1112 = vmatprep.subr.mxu0 0.0
      %1113 = vmatpush1.msra.mxu0 0.0
      %1114 = vmatprep.subr.mxu0 0.0
      %1115 = vmatpush1.msra.mxu0 0.0
      %1116 = vmatprep.subr.mxu0 0.0
      %1117 = vmatpush1.msra.mxu0 0.0
      %1118 = vmatprep.subr.mxu0 0.0
      %1119 = vmatpush1.msra.mxu0 0.0
      %1120 = vmatprep.subr.mxu0 %v1088
      %1121 = vmatpush1.msra.mxu0 %v1086
      %1122 = vmatprep.subr.mxu0 0.0
      %1123 = vmatpush2.msra.mxu0 0.0
      %1124 = vmatprep.subr.mxu0 0.0
      %1125 = vmatpush2.msra.mxu0 0.0
      %1126 = vmatprep.subr.mxu0 0.0
      %1127 = vmatpush2.msra.mxu0 0.0
      %1128 = vmatprep.subr.mxu0 0.0
      %1129 = vmatpush2.msra.mxu0 0.0
      %1130 = vmatprep.subr.mxu0 0.0
      %1131 = vmatpush2.msra.mxu0 0.0
      %1132 = vmatprep.subr.mxu0 0.0
      %1133 = vmatpush2.msra.mxu0 0.0
      %1134 = vmatprep.subr.mxu0 0.0
      %1135 = vmatpush2.msra.mxu0 0.0
      %1136 = vmatprep.subr.mxu0 0.0
      %1137 = vmatpush2.msra.mxu0 0.0
      %1138 = vmatprep.subr.mxu0 0.0
      %1139 = vmatpush2.msra.mxu0 0.0
      %1140 = vmatprep.subr.mxu0 0.0
      %1141 = vmatpush2.msra.mxu0 0.0
      %1142 = vmatprep.subr.mxu0 0.0
      %1143 = vmatpush2.msra.mxu0 0.0
      %1144 = vmatprep.subr.mxu0 0.0
      %1145 = vmatpush2.msra.mxu0 0.0
      %1146 = vmatprep.subr.mxu0 0.0
      %1147 = vmatpush2.msra.mxu0 0.0
      %1148 = vmatprep.subr.mxu0 0.0
      %1149 = vmatpush2.msra.mxu0 0.0
      %1150 = vmatprep.subr.mxu0 0.0
      %1151 = vmatpush2.msra.mxu0 0.0
      %1152 = vmatprep.subr.mxu0 0.0
      %1153 = vmatpush2.msra.mxu0 0.0
      %1154 = vmatprep.mubr.f32.mxu0 0.0
      %1155 = vmatmul.mubr.f32.gmra.mxu0 %v1084
      %v1156 = vpop.f32.mrf.mxu0
      %v1157 = vadd.f32 0.0, %v1156
      %v1158 = vpop.f32.mrf.mxu0
      %v1159 = vadd.f32 0.0, %v1158
      %1160 = vdwg.mxu0
      %v1161 = vadd.f32 %v1063, %v1157
      %v1162 = vadd.f32 %v1065, %v1159
      %v1163 = vmul.f32 %v308, %v603
      %v1164 = vmul.f32 %v309, %v604
      %v1165 = vadd.f32 %v882, %v1163
      %v1166 = vadd.f32 %v883, %v1164
      %v1167 = vmul.f32 %v312, %v1161
      %v1168 = vmul.f32 %v313, %v1162
      %v1169 = vadd.f32 %v1165, %v1167
      %v1170 = vadd.f32 %v1166, %v1168
      %v1171 = vld [vmem:[%s2] sm:$0xf]
      %1173 = vset.pattern.permute.xlu0 0
      %1174 = vperm.xlu0 %1173, %v1171
      %v1175 = vpop.permute.xlu0 %1174
      %v1177 = vmul.f32 %v1169, %v1175
      %v1178 = vmul.f32 %v1170, %v1175
      %v1179 = vld [vmem:[%s3] sm:$0xf]
      %1181 = vset.pattern.permute.xlu0 0
      %1182 = vperm.xlu0 %1181, %v1179
      %v1183 = vpop.permute.xlu0 %1182
      %v1185 = vadd.f32 %v1177, %v1183
      %v1186 = vadd.f32 %v1178, %v1183
      %vm1187 = vcmp.ge.f32.partialorder %v1185, 0.0
      %vm1188 = vcmp.ge.f32.partialorder %v1186, 0.0
      %v1189 = vmul.f32 %v1185, 0.2
      %v1190 = vmul.f32 %v1186, 0.2
      %v1191 = vsel %vm1187, %v1185, %v1189
      %v1192 = vsel %vm1188, %v1186, %v1190
      %v1195 = vcombine.low %v1191, %v1192
      %1196 = vrot.lane.b32.xlu0 %v1195, 17
      %v1197 = vpop.permute.xlu0 %1196
      %v1198 = vrot.slane %v1197, 4
      %v1199 = vsel %vm325, %v1198, %v1197
      %1202 = vst.msk [vmem:[#allocation3] sm:$0xff] %vm331, %v1199
      %1203 = vst.msk [vmem:[#allocation3 + $0x8] sm:$0xf] %vm314, %v1198
      %v1204 = vld [vmem:[#allocation3] sm:$0xff]
      %v1205 = vld [vmem:[%s4] sm:$0xf]
      %v1206 = vld [vmem:[#allocation3 + $0x8] sm:$0xf]
      %s1207 = scalar_lea.vmem %s4, 12
      %v1208 = vld [vmem:[%s1207] sm:$0xf]
      %v1211 = vcombine.high %v1204, %v1204
      %1212 = vrot.lane.b32.xlu0 %v1204, 112
      %v1213 = vpop.permute.xlu0 %1212
      %1214 = vrot.lane.b32.xlu0 %v1211, 112
      %v1215 = vpop.permute.xlu0 %1214
      %1216 = vrot.lane.b32.xlu0 %v1206, 112
      %v1217 = vpop.permute.xlu0 %1216
      %v1218 = vsel %vm348, %v1213, %v1215
      %v1219 = vsel %vm348, %v1215, %v1217
      %v1221 = vsel %vm351, %v1208, 0
      %v1223 = vsel %vm355, %v1218, 0
      %v1225 = vsel %vm355, %v1219, 0
      %1227 = vmatprep.subr.mxu0 0.0
      %1228 = vmatpush1.msra.mxu0 0.0
      %1229 = vmatprep.subr.mxu0 0.0
      %1230 = vmatpush1.msra.mxu0 0.0
      %1231 = vmatprep.subr.mxu0 0.0
      %1232 = vmatpush1.msra.mxu0 0.0
      %1233 = vmatprep.subr.mxu0 0.0
      %1234 = vmatpush1.msra.mxu0 0.0
      %1235 = vmatprep.subr.mxu0 0.0
      %1236 = vmatpush1.msra.mxu0 0.0
      %1237 = vmatprep.subr.mxu0 0.0
      %1238 = vmatpush1.msra.mxu0 0.0
      %1239 = vmatprep.subr.mxu0 0.0
      %1240 = vmatpush1.msra.mxu0 0.0
      %1241 = vmatprep.subr.mxu0 0.0
      %1242 = vmatpush1.msra.mxu0 0.0
      %1243 = vmatprep.subr.mxu0 0.0
      %1244 = vmatpush1.msra.mxu0 0.0
      %1245 = vmatprep.subr.mxu0 0.0
      %1246 = vmatpush1.msra.mxu0 0.0
      %1247 = vmatprep.subr.mxu0 0.0
      %1248 = vmatpush1.msra.mxu0 0.0
      %1249 = vmatprep.subr.mxu0 0.0
      %1250 = vmatpush1.msra.mxu0 0.0
      %1251 = vmatprep.subr.mxu0 0.0
      %1252 = vmatpush1.msra.mxu0 0.0
      %1253 = vmatprep.subr.mxu0 0.0
      %1254 = vmatpush1.msra.mxu0 0.0
      %1255 = vmatprep.subr.mxu0 0.0
      %1256 = vmatpush1.msra.mxu0 0.0
      %1257 = vmatprep.subr.mxu0 %v1225
      %1258 = vmatpush1.msra.mxu0 %v1223
      %1259 = vmatprep.subr.mxu0 0.0
      %1260 = vmatpush2.msra.mxu0 0.0
      %1261 = vmatprep.subr.mxu0 0.0
      %1262 = vmatpush2.msra.mxu0 0.0
      %1263 = vmatprep.subr.mxu0 0.0
      %1264 = vmatpush2.msra.mxu0 0.0
      %1265 = vmatprep.subr.mxu0 0.0
      %1266 = vmatpush2.msra.mxu0 0.0
      %1267 = vmatprep.subr.mxu0 0.0
      %1268 = vmatpush2.msra.mxu0 0.0
      %1269 = vmatprep.subr.mxu0 0.0
      %1270 = vmatpush2.msra.mxu0 0.0
      %1271 = vmatprep.subr.mxu0 0.0
      %1272 = vmatpush2.msra.mxu0 0.0
      %1273 = vmatprep.subr.mxu0 0.0
      %1274 = vmatpush2.msra.mxu0 0.0
      %1275 = vmatprep.subr.mxu0 0.0
      %1276 = vmatpush2.msra.mxu0 0.0
      %1277 = vmatprep.subr.mxu0 0.0
      %1278 = vmatpush2.msra.mxu0 0.0
      %1279 = vmatprep.subr.mxu0 0.0
      %1280 = vmatpush2.msra.mxu0 0.0
      %1281 = vmatprep.subr.mxu0 0.0
      %1282 = vmatpush2.msra.mxu0 0.0
      %1283 = vmatprep.subr.mxu0 0.0
      %1284 = vmatpush2.msra.mxu0 0.0
      %1285 = vmatprep.subr.mxu0 0.0
      %1286 = vmatpush2.msra.mxu0 0.0
      %1287 = vmatprep.subr.mxu0 0.0
      %1288 = vmatpush2.msra.mxu0 0.0
      %1289 = vmatprep.subr.mxu0 0.0
      %1290 = vmatpush2.msra.mxu0 0.0
      %1291 = vmatprep.mubr.f32.mxu0 0.0
      %1292 = vmatmul.mubr.f32.gmra.mxu0 %v1221
      %v1293 = vpop.f32.mrf.mxu0
      %v1294 = vadd.f32 0.0, %v1293
      %v1295 = vpop.f32.mrf.mxu0
      %v1296 = vadd.f32 0.0, %v1295
      %1297 = vdwg.mxu0
      %v1299 = vsel %vm351, %v1205, 0
      %v1301 = vsel %vm355, %v1204, 0
      %v1303 = vsel %vm355, %v1211, 0
      %1305 = vmatprep.subr.mxu0 0.0
      %1306 = vmatpush1.msra.mxu0 0.0
      %1307 = vmatprep.subr.mxu0 0.0
      %1308 = vmatpush1.msra.mxu0 0.0
      %1309 = vmatprep.subr.mxu0 0.0
      %1310 = vmatpush1.msra.mxu0 0.0
      %1311 = vmatprep.subr.mxu0 0.0
      %1312 = vmatpush1.msra.mxu0 0.0
      %1313 = vmatprep.subr.mxu0 0.0
      %1314 = vmatpush1.msra.mxu0 0.0
      %1315 = vmatprep.subr.mxu0 0.0
      %1316 = vmatpush1.msra.mxu0 0.0
      %1317 = vmatprep.subr.mxu0 0.0
      %1318 = vmatpush1.msra.mxu0 0.0
      %1319 = vmatprep.subr.mxu0 0.0
      %1320 = vmatpush1.msra.mxu0 0.0
      %1321 = vmatprep.subr.mxu0 0.0
      %1322 = vmatpush1.msra.mxu0 0.0
      %1323 = vmatprep.subr.mxu0 0.0
      %1324 = vmatpush1.msra.mxu0 0.0
      %1325 = vmatprep.subr.mxu0 0.0
      %1326 = vmatpush1.msra.mxu0 0.0
      %1327 = vmatprep.subr.mxu0 0.0
      %1328 = vmatpush1.msra.mxu0 0.0
      %1329 = vmatprep.subr.mxu0 0.0
      %1330 = vmatpush1.msra.mxu0 0.0
      %1331 = vmatprep.subr.mxu0 0.0
      %1332 = vmatpush1.msra.mxu0 0.0
      %1333 = vmatprep.subr.mxu0 0.0
      %1334 = vmatpush1.msra.mxu0 0.0
      %1335 = vmatprep.subr.mxu0 %v1303
      %1336 = vmatpush1.msra.mxu0 %v1301
      %1337 = vmatprep.subr.mxu0 0.0
      %1338 = vmatpush2.msra.mxu0 0.0
      %1339 = vmatprep.subr.mxu0 0.0
      %1340 = vmatpush2.msra.mxu0 0.0
      %1341 = vmatprep.subr.mxu0 0.0
      %1342 = vmatpush2.msra.mxu0 0.0
      %1343 = vmatprep.subr.mxu0 0.0
      %1344 = vmatpush2.msra.mxu0 0.0
      %1345 = vmatprep.subr.mxu0 0.0
      %1346 = vmatpush2.msra.mxu0 0.0
      %1347 = vmatprep.subr.mxu0 0.0
      %1348 = vmatpush2.msra.mxu0 0.0
      %1349 = vmatprep.subr.mxu0 0.0
      %1350 = vmatpush2.msra.mxu0 0.0
      %1351 = vmatprep.subr.mxu0 0.0
      %1352 = vmatpush2.msra.mxu0 0.0
      %1353 = vmatprep.subr.mxu0 0.0
      %1354 = vmatpush2.msra.mxu0 0.0
      %1355 = vmatprep.subr.mxu0 0.0
      %1356 = vmatpush2.msra.mxu0 0.0
      %1357 = vmatprep.subr.mxu0 0.0
      %1358 = vmatpush2.msra.mxu0 0.0
      %1359 = vmatprep.subr.mxu0 0.0
      %1360 = vmatpush2.msra.mxu0 0.0
      %1361 = vmatprep.subr.mxu0 0.0
      %1362 = vmatpush2.msra.mxu0 0.0
      %1363 = vmatprep.subr.mxu0 0.0
      %1364 = vmatpush2.msra.mxu0 0.0
      %1365 = vmatprep.subr.mxu0 0.0
      %1366 = vmatpush2.msra.mxu0 0.0
      %1367 = vmatprep.subr.mxu0 0.0
      %1368 = vmatpush2.msra.mxu0 0.0
      %1369 = vmatprep.mubr.f32.mxu0 0.0
      %1370 = vmatmul.mubr.f32.gmra.mxu0 %v1299
      %v1371 = vpop.f32.mrf.mxu0
      %v1372 = vadd.f32 %v1294, %v1371
      %v1373 = vpop.f32.mrf.mxu0
      %v1374 = vadd.f32 %v1296, %v1373
      %1375 = vdwg.mxu0
      %v1376 = vld [vmem:[#allocation3] sm:$0xff]
      %v1377 = vld [vmem:[#allocation3 + $0x8] sm:$0xf]
      %s1378 = scalar_lea.vmem %s4, 24
      %v1379 = vld [vmem:[%s1378] sm:$0xf]
      %v1382 = vcombine.high %v1376, %v1376
      %1383 = vrot.lane.b32.xlu0 %v1376, 96
      %v1384 = vpop.permute.xlu0 %1383
      %1385 = vrot.lane.b32.xlu0 %v1382, 96
      %v1386 = vpop.permute.xlu0 %1385
      %1387 = vrot.lane.b32.xlu0 %v1377, 96
      %v1388 = vpop.permute.xlu0 %1387
      %v1389 = vsel %vm522, %v1384, %v1386
      %v1390 = vsel %vm522, %v1386, %v1388
      %v1392 = vsel %vm351, %v1379, 0
      %v1394 = vsel %vm355, %v1389, 0
      %v1396 = vsel %vm355, %v1390, 0
      %1398 = vmatprep.subr.mxu0 0.0
      %1399 = vmatpush1.msra.mxu0 0.0
      %1400 = vmatprep.subr.mxu0 0.0
      %1401 = vmatpush1.msra.mxu0 0.0
      %1402 = vmatprep.subr.mxu0 0.0
      %1403 = vmatpush1.msra.mxu0 0.0
      %1404 = vmatprep.subr.mxu0 0.0
      %1405 = vmatpush1.msra.mxu0 0.0
      %1406 = vmatprep.subr.mxu0 0.0
      %1407 = vmatpush1.msra.mxu0 0.0
      %1408 = vmatprep.subr.mxu0 0.0
      %1409 = vmatpush1.msra.mxu0 0.0
      %1410 = vmatprep.subr.mxu0 0.0
      %1411 = vmatpush1.msra.mxu0 0.0
      %1412 = vmatprep.subr.mxu0 0.0
      %1413 = vmatpush1.msra.mxu0 0.0
      %1414 = vmatprep.subr.mxu0 0.0
      %1415 = vmatpush1.msra.mxu0 0.0
      %1416 = vmatprep.subr.mxu0 0.0
      %1417 = vmatpush1.msra.mxu0 0.0
      %1418 = vmatprep.subr.mxu0 0.0
      %1419 = vmatpush1.msra.mxu0 0.0
      %1420 = vmatprep.subr.mxu0 0.0
      %1421 = vmatpush1.msra.mxu0 0.0
      %1422 = vmatprep.subr.mxu0 0.0
      %1423 = vmatpush1.msra.mxu0 0.0
      %1424 = vmatprep.subr.mxu0 0.0
      %1425 = vmatpush1.msra.mxu0 0.0
      %1426 = vmatprep.subr.mxu0 0.0
      %1427 = vmatpush1.msra.mxu0 0.0
      %1428 = vmatprep.subr.mxu0 %v1396
      %1429 = vmatpush1.msra.mxu0 %v1394
      %1430 = vmatprep.subr.mxu0 0.0
      %1431 = vmatpush2.msra.mxu0 0.0
      %1432 = vmatprep.subr.mxu0 0.0
      %1433 = vmatpush2.msra.mxu0 0.0
      %1434 = vmatprep.subr.mxu0 0.0
      %1435 = vmatpush2.msra.mxu0 0.0
      %1436 = vmatprep.subr.mxu0 0.0
      %1437 = vmatpush2.msra.mxu0 0.0
      %1438 = vmatprep.subr.mxu0 0.0
      %1439 = vmatpush2.msra.mxu0 0.0
      %1440 = vmatprep.subr.mxu0 0.0
      %1441 = vmatpush2.msra.mxu0 0.0
      %1442 = vmatprep.subr.mxu0 0.0
      %1443 = vmatpush2.msra.mxu0 0.0
      %1444 = vmatprep.subr.mxu0 0.0
      %1445 = vmatpush2.msra.mxu0 0.0
      %1446 = vmatprep.subr.mxu0 0.0
      %1447 = vmatpush2.msra.mxu0 0.0
      %1448 = vmatprep.subr.mxu0 0.0
      %1449 = vmatpush2.msra.mxu0 0.0
      %1450 = vmatprep.subr.mxu0 0.0
      %1451 = vmatpush2.msra.mxu0 0.0
      %1452 = vmatprep.subr.mxu0 0.0
      %1453 = vmatpush2.msra.mxu0 0.0
      %1454 = vmatprep.subr.mxu0 0.0
      %1455 = vmatpush2.msra.mxu0 0.0
      %1456 = vmatprep.subr.mxu0 0.0
      %1457 = vmatpush2.msra.mxu0 0.0
      %1458 = vmatprep.subr.mxu0 0.0
      %1459 = vmatpush2.msra.mxu0 0.0
      %1460 = vmatprep.subr.mxu0 0.0
      %1461 = vmatpush2.msra.mxu0 0.0
      %1462 = vmatprep.mubr.f32.mxu0 0.0
      %1463 = vmatmul.mubr.f32.gmra.mxu0 %v1392
      %v1464 = vpop.f32.mrf.mxu0
      %v1465 = vadd.f32 0.0, %v1464
      %v1466 = vpop.f32.mrf.mxu0
      %v1467 = vadd.f32 0.0, %v1466
      %1468 = vdwg.mxu0
      %v1469 = vadd.f32 %v1372, %v1465
      %v1470 = vadd.f32 %v1374, %v1467
      %v1471 = vld [vmem:[#allocation3] sm:$0xff]
      %v1472 = vld [vmem:[#allocation3 + $0x8] sm:$0xf]
      %s1473 = scalar_lea.vmem %s4, 4
      %v1474 = vld [vmem:[%s1473] sm:$0xf]
      %s1475 = scalar_lea.vmem %s4, 16
      %v1476 = vld [vmem:[%s1475] sm:$0xf]
      %v1479 = vcombine.high %v1471, %v1471
      %1480 = vrot.lane.b32.xlu0 %v1471, 111
      %v1481 = vpop.permute.xlu0 %1480
      %1482 = vrot.lane.b32.xlu0 %v1479, 111
      %v1483 = vpop.permute.xlu0 %1482
      %1484 = vrot.lane.b32.xlu0 %v1472, 111
      %v1485 = vpop.permute.xlu0 %1484
      %v1486 = vsel %vm620, %v1481, %v1483
      %v1487 = vsel %vm620, %v1483, %v1485
      %v1489 = vsel %vm351, %v1476, 0
      %v1491 = vsel %vm355, %v1486, 0
      %v1493 = vsel %vm355, %v1487, 0
      %1495 = vmatprep.subr.mxu0 0.0
      %1496 = vmatpush1.msra.mxu0 0.0
      %1497 = vmatprep.subr.mxu0 0.0
      %1498 = vmatpush1.msra.mxu0 0.0
      %1499 = vmatprep.subr.mxu0 0.0
      %1500 = vmatpush1.msra.mxu0 0.0
      %1501 = vmatprep.subr.mxu0 0.0
      %1502 = vmatpush1.msra.mxu0 0.0
      %1503 = vmatprep.subr.mxu0 0.0
      %1504 = vmatpush1.msra.mxu0 0.0
      %1505 = vmatprep.subr.mxu0 0.0
      %1506 = vmatpush1.msra.mxu0 0.0
      %1507 = vmatprep.subr.mxu0 0.0
      %1508 = vmatpush1.msra.mxu0 0.0
      %1509 = vmatprep.subr.mxu0 0.0
      %1510 = vmatpush1.msra.mxu0 0.0
      %1511 = vmatprep.subr.mxu0 0.0
      %1512 = vmatpush1.msra.mxu0 0.0
      %1513 = vmatprep.subr.mxu0 0.0
      %1514 = vmatpush1.msra.mxu0 0.0
      %1515 = vmatprep.subr.mxu0 0.0
      %1516 = vmatpush1.msra.mxu0 0.0
      %1517 = vmatprep.subr.mxu0 0.0
      %1518 = vmatpush1.msra.mxu0 0.0
      %1519 = vmatprep.subr.mxu0 0.0
      %1520 = vmatpush1.msra.mxu0 0.0
      %1521 = vmatprep.subr.mxu0 0.0
      %1522 = vmatpush1.msra.mxu0 0.0
      %1523 = vmatprep.subr.mxu0 0.0
      %1524 = vmatpush1.msra.mxu0 0.0
      %1525 = vmatprep.subr.mxu0 %v1493
      %1526 = vmatpush1.msra.mxu0 %v1491
      %1527 = vmatprep.subr.mxu0 0.0
      %1528 = vmatpush2.msra.mxu0 0.0
      %1529 = vmatprep.subr.mxu0 0.0
      %1530 = vmatpush2.msra.mxu0 0.0
      %1531 = vmatprep.subr.mxu0 0.0
      %1532 = vmatpush2.msra.mxu0 0.0
      %1533 = vmatprep.subr.mxu0 0.0
      %1534 = vmatpush2.msra.mxu0 0.0
      %1535 = vmatprep.subr.mxu0 0.0
      %1536 = vmatpush2.msra.mxu0 0.0
      %1537 = vmatprep.subr.mxu0 0.0
      %1538 = vmatpush2.msra.mxu0 0.0
      %1539 = vmatprep.subr.mxu0 0.0
      %1540 = vmatpush2.msra.mxu0 0.0
      %1541 = vmatprep.subr.mxu0 0.0
      %1542 = vmatpush2.msra.mxu0 0.0
      %1543 = vmatprep.subr.mxu0 0.0
      %1544 = vmatpush2.msra.mxu0 0.0
      %1545 = vmatprep.subr.mxu0 0.0
      %1546 = vmatpush2.msra.mxu0 0.0
      %1547 = vmatprep.subr.mxu0 0.0
      %1548 = vmatpush2.msra.mxu0 0.0
      %1549 = vmatprep.subr.mxu0 0.0
      %1550 = vmatpush2.msra.mxu0 0.0
      %1551 = vmatprep.subr.mxu0 0.0
      %1552 = vmatpush2.msra.mxu0 0.0
      %1553 = vmatprep.subr.mxu0 0.0
      %1554 = vmatpush2.msra.mxu0 0.0
      %1555 = vmatprep.subr.mxu0 0.0
      %1556 = vmatpush2.msra.mxu0 0.0
      %1557 = vmatprep.subr.mxu0 0.0
      %1558 = vmatpush2.msra.mxu0 0.0
      %1559 = vmatprep.mubr.f32.mxu0 0.0
      %1560 = vmatmul.mubr.f32.gmra.mxu0 %v1489
      %v1561 = vpop.f32.mrf.mxu0
      %v1562 = vadd.f32 0.0, %v1561
      %v1563 = vpop.f32.mrf.mxu0
      %v1564 = vadd.f32 0.0, %v1563
      %1565 = vdwg.mxu0
      %1566 = vrot.lane.b32.xlu0 %v1471, 127
      %v1567 = vpop.permute.xlu0 %1566
      %1568 = vrot.lane.b32.xlu0 %v1479, 127
      %v1569 = vpop.permute.xlu0 %1568
      %1570 = vrot.lane.b32.xlu0 %v1472, 127
      %v1571 = vpop.permute.xlu0 %1570
      %v1572 = vsel %vm707, %v1567, %v1569
      %v1573 = vsel %vm707, %v1569, %v1571
      %v1575 = vsel %vm351, %v1474, 0
      %v1577 = vsel %vm355, %v1572, 0
      %v1579 = vsel %vm355, %v1573, 0
      %1581 = vmatprep.subr.mxu0 0.0
      %1582 = vmatpush1.msra.mxu0 0.0
      %1583 = vmatprep.subr.mxu0 0.0
      %1584 = vmatpush1.msra.mxu0 0.0
      %1585 = vmatprep.subr.mxu0 0.0
      %1586 = vmatpush1.msra.mxu0 0.0
      %1587 = vmatprep.subr.mxu0 0.0
      %1588 = vmatpush1.msra.mxu0 0.0
      %1589 = vmatprep.subr.mxu0 0.0
      %1590 = vmatpush1.msra.mxu0 0.0
      %1591 = vmatprep.subr.mxu0 0.0
      %1592 = vmatpush1.msra.mxu0 0.0
      %1593 = vmatprep.subr.mxu0 0.0
      %1594 = vmatpush1.msra.mxu0 0.0
      %1595 = vmatprep.subr.mxu0 0.0
      %1596 = vmatpush1.msra.mxu0 0.0
      %1597 = vmatprep.subr.mxu0 0.0
      %1598 = vmatpush1.msra.mxu0 0.0
      %1599 = vmatprep.subr.mxu0 0.0
      %1600 = vmatpush1.msra.mxu0 0.0
      %1601 = vmatprep.subr.mxu0 0.0
      %1602 = vmatpush1.msra.mxu0 0.0
      %1603 = vmatprep.subr.mxu0 0.0
      %1604 = vmatpush1.msra.mxu0 0.0
      %1605 = vmatprep.subr.mxu0 0.0
      %1606 = vmatpush1.msra.mxu0 0.0
      %1607 = vmatprep.subr.mxu0 0.0
      %1608 = vmatpush1.msra.mxu0 0.0
      %1609 = vmatprep.subr.mxu0 0.0
      %1610 = vmatpush1.msra.mxu0 0.0
      %1611 = vmatprep.subr.mxu0 %v1579
      %1612 = vmatpush1.msra.mxu0 %v1577
      %1613 = vmatprep.subr.mxu0 0.0
      %1614 = vmatpush2.msra.mxu0 0.0
      %1615 = vmatprep.subr.mxu0 0.0
      %1616 = vmatpush2.msra.mxu0 0.0
      %1617 = vmatprep.subr.mxu0 0.0
      %1618 = vmatpush2.msra.mxu0 0.0
      %1619 = vmatprep.subr.mxu0 0.0
      %1620 = vmatpush2.msra.mxu0 0.0
      %1621 = vmatprep.subr.mxu0 0.0
      %1622 = vmatpush2.msra.mxu0 0.0
      %1623 = vmatprep.subr.mxu0 0.0
      %1624 = vmatpush2.msra.mxu0 0.0
      %1625 = vmatprep.subr.mxu0 0.0
      %1626 = vmatpush2.msra.mxu0 0.0
      %1627 = vmatprep.subr.mxu0 0.0
      %1628 = vmatpush2.msra.mxu0 0.0
      %1629 = vmatprep.subr.mxu0 0.0
      %1630 = vmatpush2.msra.mxu0 0.0
      %1631 = vmatprep.subr.mxu0 0.0
      %1632 = vmatpush2.msra.mxu0 0.0
      %1633 = vmatprep.subr.mxu0 0.0
      %1634 = vmatpush2.msra.mxu0 0.0
      %1635 = vmatprep.subr.mxu0 0.0
      %1636 = vmatpush2.msra.mxu0 0.0
      %1637 = vmatprep.subr.mxu0 0.0
      %1638 = vmatpush2.msra.mxu0 0.0
      %1639 = vmatprep.subr.mxu0 0.0
      %1640 = vmatpush2.msra.mxu0 0.0
      %1641 = vmatprep.subr.mxu0 0.0
      %1642 = vmatpush2.msra.mxu0 0.0
      %1643 = vmatprep.subr.mxu0 0.0
      %1644 = vmatpush2.msra.mxu0 0.0
      %1645 = vmatprep.mubr.f32.mxu0 0.0
      %1646 = vmatmul.mubr.f32.gmra.mxu0 %v1575
      %v1647 = vpop.f32.mrf.mxu0
      %v1648 = vadd.f32 %v1562, %v1647
      %v1649 = vpop.f32.mrf.mxu0
      %v1650 = vadd.f32 %v1564, %v1649
      %1651 = vdwg.mxu0
      %v1652 = vld [vmem:[#allocation3] sm:$0xff]
      %v1653 = vld [vmem:[#allocation3 + $0x8] sm:$0xf]
      %s1654 = scalar_lea.vmem %s4, 28
      %v1655 = vld [vmem:[%s1654] sm:$0xf]
      %v1658 = vcombine.high %v1652, %v1652
      %1659 = vrot.lane.b32.xlu0 %v1652, 95
      %v1660 = vpop.permute.xlu0 %1659
      %1661 = vrot.lane.b32.xlu0 %v1658, 95
      %v1662 = vpop.permute.xlu0 %1661
      %1663 = vrot.lane.b32.xlu0 %v1653, 95
      %v1664 = vpop.permute.xlu0 %1663
      %v1665 = vsel %vm801, %v1660, %v1662
      %v1666 = vsel %vm801, %v1662, %v1664
      %v1668 = vsel %vm351, %v1655, 0
      %v1670 = vsel %vm355, %v1665, 0
      %v1672 = vsel %vm355, %v1666, 0
      %1674 = vmatprep.subr.mxu0 0.0
      %1675 = vmatpush1.msra.mxu0 0.0
      %1676 = vmatprep.subr.mxu0 0.0
      %1677 = vmatpush1.msra.mxu0 0.0
      %1678 = vmatprep.subr.mxu0 0.0
      %1679 = vmatpush1.msra.mxu0 0.0
      %1680 = vmatprep.subr.mxu0 0.0
      %1681 = vmatpush1.msra.mxu0 0.0
      %1682 = vmatprep.subr.mxu0 0.0
      %1683 = vmatpush1.msra.mxu0 0.0
      %1684 = vmatprep.subr.mxu0 0.0
      %1685 = vmatpush1.msra.mxu0 0.0
      %1686 = vmatprep.subr.mxu0 0.0
      %1687 = vmatpush1.msra.mxu0 0.0
      %1688 = vmatprep.subr.mxu0 0.0
      %1689 = vmatpush1.msra.mxu0 0.0
      %1690 = vmatprep.subr.mxu0 0.0
      %1691 = vmatpush1.msra.mxu0 0.0
      %1692 = vmatprep.subr.mxu0 0.0
      %1693 = vmatpush1.msra.mxu0 0.0
      %1694 = vmatprep.subr.mxu0 0.0
      %1695 = vmatpush1.msra.mxu0 0.0
      %1696 = vmatprep.subr.mxu0 0.0
      %1697 = vmatpush1.msra.mxu0 0.0
      %1698 = vmatprep.subr.mxu0 0.0
      %1699 = vmatpush1.msra.mxu0 0.0
      %1700 = vmatprep.subr.mxu0 0.0
      %1701 = vmatpush1.msra.mxu0 0.0
      %1702 = vmatprep.subr.mxu0 0.0
      %1703 = vmatpush1.msra.mxu0 0.0
      %1704 = vmatprep.subr.mxu0 %v1672
      %1705 = vmatpush1.msra.mxu0 %v1670
      %1706 = vmatprep.subr.mxu0 0.0
      %1707 = vmatpush2.msra.mxu0 0.0
      %1708 = vmatprep.subr.mxu0 0.0
      %1709 = vmatpush2.msra.mxu0 0.0
      %1710 = vmatprep.subr.mxu0 0.0
      %1711 = vmatpush2.msra.mxu0 0.0
      %1712 = vmatprep.subr.mxu0 0.0
      %1713 = vmatpush2.msra.mxu0 0.0
      %1714 = vmatprep.subr.mxu0 0.0
      %1715 = vmatpush2.msra.mxu0 0.0
      %1716 = vmatprep.subr.mxu0 0.0
      %1717 = vmatpush2.msra.mxu0 0.0
      %1718 = vmatprep.subr.mxu0 0.0
      %1719 = vmatpush2.msra.mxu0 0.0
      %1720 = vmatprep.subr.mxu0 0.0
      %1721 = vmatpush2.msra.mxu0 0.0
      %1722 = vmatprep.subr.mxu0 0.0
      %1723 = vmatpush2.msra.mxu0 0.0
      %1724 = vmatprep.subr.mxu0 0.0
      %1725 = vmatpush2.msra.mxu0 0.0
      %1726 = vmatprep.subr.mxu0 0.0
      %1727 = vmatpush2.msra.mxu0 0.0
      %1728 = vmatprep.subr.mxu0 0.0
      %1729 = vmatpush2.msra.mxu0 0.0
      %1730 = vmatprep.subr.mxu0 0.0
      %1731 = vmatpush2.msra.mxu0 0.0
      %1732 = vmatprep.subr.mxu0 0.0
      %1733 = vmatpush2.msra.mxu0 0.0
      %1734 = vmatprep.subr.mxu0 0.0
      %1735 = vmatpush2.msra.mxu0 0.0
      %1736 = vmatprep.subr.mxu0 0.0
      %1737 = vmatpush2.msra.mxu0 0.0
      %1738 = vmatprep.mubr.f32.mxu0 0.0
      %1739 = vmatmul.mubr.f32.gmra.mxu0 %v1668
      %v1740 = vpop.f32.mrf.mxu0
      %v1741 = vadd.f32 0.0, %v1740
      %v1742 = vpop.f32.mrf.mxu0
      %v1743 = vadd.f32 0.0, %v1742
      %1744 = vdwg.mxu0
      %v1745 = vadd.f32 %v1648, %v1741
      %v1746 = vadd.f32 %v1650, %v1743
      %v1747 = vld [vmem:[#allocation3] sm:$0xff]
      %v1748 = vld [vmem:[#allocation3 + $0x8] sm:$0xf]
      %s1749 = scalar_lea.vmem %s4, 8
      %v1750 = vld [vmem:[%s1749] sm:$0xf]
      %s1751 = scalar_lea.vmem %s4, 20
      %v1752 = vld [vmem:[%s1751] sm:$0xf]
      %v1755 = vcombine.high %v1747, %v1747
      %1756 = vrot.lane.b32.xlu0 %v1747, 110
      %v1757 = vpop.permute.xlu0 %1756
      %1758 = vrot.lane.b32.xlu0 %v1755, 110
      %v1759 = vpop.permute.xlu0 %1758
      %1760 = vrot.lane.b32.xlu0 %v1748, 110
      %v1761 = vpop.permute.xlu0 %1760
      %v1762 = vsel %vm899, %v1757, %v1759
      %v1763 = vsel %vm899, %v1759, %v1761
      %v1765 = vsel %vm351, %v1752, 0
      %v1767 = vsel %vm355, %v1762, 0
      %v1769 = vsel %vm355, %v1763, 0
      %1771 = vmatprep.subr.mxu0 0.0
      %1772 = vmatpush1.msra.mxu0 0.0
      %1773 = vmatprep.subr.mxu0 0.0
      %1774 = vmatpush1.msra.mxu0 0.0
      %1775 = vmatprep.subr.mxu0 0.0
      %1776 = vmatpush1.msra.mxu0 0.0
      %1777 = vmatprep.subr.mxu0 0.0
      %1778 = vmatpush1.msra.mxu0 0.0
      %1779 = vmatprep.subr.mxu0 0.0
      %1780 = vmatpush1.msra.mxu0 0.0
      %1781 = vmatprep.subr.mxu0 0.0
      %1782 = vmatpush1.msra.mxu0 0.0
      %1783 = vmatprep.subr.mxu0 0.0
      %1784 = vmatpush1.msra.mxu0 0.0
      %1785 = vmatprep.subr.mxu0 0.0
      %1786 = vmatpush1.msra.mxu0 0.0
      %1787 = vmatprep.subr.mxu0 0.0
      %1788 = vmatpush1.msra.mxu0 0.0
      %1789 = vmatprep.subr.mxu0 0.0
      %1790 = vmatpush1.msra.mxu0 0.0
      %1791 = vmatprep.subr.mxu0 0.0
      %1792 = vmatpush1.msra.mxu0 0.0
      %1793 = vmatprep.subr.mxu0 0.0
      %1794 = vmatpush1.msra.mxu0 0.0
      %1795 = vmatprep.subr.mxu0 0.0
      %1796 = vmatpush1.msra.mxu0 0.0
      %1797 = vmatprep.subr.mxu0 0.0
      %1798 = vmatpush1.msra.mxu0 0.0
      %1799 = vmatprep.subr.mxu0 0.0
      %1800 = vmatpush1.msra.mxu0 0.0
      %1801 = vmatprep.subr.mxu0 %v1769
      %1802 = vmatpush1.msra.mxu0 %v1767
      %1803 = vmatprep.subr.mxu0 0.0
      %1804 = vmatpush2.msra.mxu0 0.0
      %1805 = vmatprep.subr.mxu0 0.0
      %1806 = vmatpush2.msra.mxu0 0.0
      %1807 = vmatprep.subr.mxu0 0.0
      %1808 = vmatpush2.msra.mxu0 0.0
      %1809 = vmatprep.subr.mxu0 0.0
      %1810 = vmatpush2.msra.mxu0 0.0
      %1811 = vmatprep.subr.mxu0 0.0
      %1812 = vmatpush2.msra.mxu0 0.0
      %1813 = vmatprep.subr.mxu0 0.0
      %1814 = vmatpush2.msra.mxu0 0.0
      %1815 = vmatprep.subr.mxu0 0.0
      %1816 = vmatpush2.msra.mxu0 0.0
      %1817 = vmatprep.subr.mxu0 0.0
      %1818 = vmatpush2.msra.mxu0 0.0
      %1819 = vmatprep.subr.mxu0 0.0
      %1820 = vmatpush2.msra.mxu0 0.0
      %1821 = vmatprep.subr.mxu0 0.0
      %1822 = vmatpush2.msra.mxu0 0.0
      %1823 = vmatprep.subr.mxu0 0.0
      %1824 = vmatpush2.msra.mxu0 0.0
      %1825 = vmatprep.subr.mxu0 0.0
      %1826 = vmatpush2.msra.mxu0 0.0
      %1827 = vmatprep.subr.mxu0 0.0
      %1828 = vmatpush2.msra.mxu0 0.0
      %1829 = vmatprep.subr.mxu0 0.0
      %1830 = vmatpush2.msra.mxu0 0.0
      %1831 = vmatprep.subr.mxu0 0.0
      %1832 = vmatpush2.msra.mxu0 0.0
      %1833 = vmatprep.subr.mxu0 0.0
      %1834 = vmatpush2.msra.mxu0 0.0
      %1835 = vmatprep.mubr.f32.mxu0 0.0
      %1836 = vmatmul.mubr.f32.gmra.mxu0 %v1765
      %v1837 = vpop.f32.mrf.mxu0
      %v1838 = vadd.f32 0.0, %v1837
      %v1839 = vpop.f32.mrf.mxu0
      %v1840 = vadd.f32 0.0, %v1839
      %1841 = vdwg.mxu0
      %1842 = vrot.lane.b32.xlu0 %v1747, 126
      %v1843 = vpop.permute.xlu0 %1842
      %1844 = vrot.lane.b32.xlu0 %v1755, 126
      %v1845 = vpop.permute.xlu0 %1844
      %1846 = vrot.lane.b32.xlu0 %v1748, 126
      %v1847 = vpop.permute.xlu0 %1846
      %v1848 = vsel %vm986, %v1843, %v1845
      %v1849 = vsel %vm986, %v1845, %v1847
      %v1851 = vsel %vm351, %v1750, 0
      %v1853 = vsel %vm355, %v1848, 0
      %v1855 = vsel %vm355, %v1849, 0
      %1857 = vmatprep.subr.mxu0 0.0
      %1858 = vmatpush1.msra.mxu0 0.0
      %1859 = vmatprep.subr.mxu0 0.0
      %1860 = vmatpush1.msra.mxu0 0.0
      %1861 = vmatprep.subr.mxu0 0.0
      %1862 = vmatpush1.msra.mxu0 0.0
      %1863 = vmatprep.subr.mxu0 0.0
      %1864 = vmatpush1.msra.mxu0 0.0
      %1865 = vmatprep.subr.mxu0 0.0
      %1866 = vmatpush1.msra.mxu0 0.0
      %1867 = vmatprep.subr.mxu0 0.0
      %1868 = vmatpush1.msra.mxu0 0.0
      %1869 = vmatprep.subr.mxu0 0.0
      %1870 = vmatpush1.msra.mxu0 0.0
      %1871 = vmatprep.subr.mxu0 0.0
      %1872 = vmatpush1.msra.mxu0 0.0
      %1873 = vmatprep.subr.mxu0 0.0
      %1874 = vmatpush1.msra.mxu0 0.0
      %1875 = vmatprep.subr.mxu0 0.0
      %1876 = vmatpush1.msra.mxu0 0.0
      %1877 = vmatprep.subr.mxu0 0.0
      %1878 = vmatpush1.msra.mxu0 0.0
      %1879 = vmatprep.subr.mxu0 0.0
      %1880 = vmatpush1.msra.mxu0 0.0
      %1881 = vmatprep.subr.mxu0 0.0
      %1882 = vmatpush1.msra.mxu0 0.0
      %1883 = vmatprep.subr.mxu0 0.0
      %1884 = vmatpush1.msra.mxu0 0.0
      %1885 = vmatprep.subr.mxu0 0.0
      %1886 = vmatpush1.msra.mxu0 0.0
      %1887 = vmatprep.subr.mxu0 %v1855
      %1888 = vmatpush1.msra.mxu0 %v1853
      %1889 = vmatprep.subr.mxu0 0.0
      %1890 = vmatpush2.msra.mxu0 0.0
      %1891 = vmatprep.subr.mxu0 0.0
      %1892 = vmatpush2.msra.mxu0 0.0
      %1893 = vmatprep.subr.mxu0 0.0
      %1894 = vmatpush2.msra.mxu0 0.0
      %1895 = vmatprep.subr.mxu0 0.0
      %1896 = vmatpush2.msra.mxu0 0.0
      %1897 = vmatprep.subr.mxu0 0.0
      %1898 = vmatpush2.msra.mxu0 0.0
      %1899 = vmatprep.subr.mxu0 0.0
      %1900 = vmatpush2.msra.mxu0 0.0
      %1901 = vmatprep.subr.mxu0 0.0
      %1902 = vmatpush2.msra.mxu0 0.0
      %1903 = vmatprep.subr.mxu0 0.0
      %1904 = vmatpush2.msra.mxu0 0.0
      %1905 = vmatprep.subr.mxu0 0.0
      %1906 = vmatpush2.msra.mxu0 0.0
      %1907 = vmatprep.subr.mxu0 0.0
      %1908 = vmatpush2.msra.mxu0 0.0
      %1909 = vmatprep.subr.mxu0 0.0
      %1910 = vmatpush2.msra.mxu0 0.0
      %1911 = vmatprep.subr.mxu0 0.0
      %1912 = vmatpush2.msra.mxu0 0.0
      %1913 = vmatprep.subr.mxu0 0.0
      %1914 = vmatpush2.msra.mxu0 0.0
      %1915 = vmatprep.subr.mxu0 0.0
      %1916 = vmatpush2.msra.mxu0 0.0
      %1917 = vmatprep.subr.mxu0 0.0
      %1918 = vmatpush2.msra.mxu0 0.0
      %1919 = vmatprep.subr.mxu0 0.0
      %1920 = vmatpush2.msra.mxu0 0.0
      %1921 = vmatprep.mubr.f32.mxu0 0.0
      %1922 = vmatmul.mubr.f32.gmra.mxu0 %v1851
      %v1923 = vpop.f32.mrf.mxu0
      %v1924 = vadd.f32 %v1838, %v1923
      %v1925 = vpop.f32.mrf.mxu0
      %v1926 = vadd.f32 %v1840, %v1925
      %1927 = vdwg.mxu0
      %v1928 = vld [vmem:[#allocation3] sm:$0xff]
      %v1929 = vld [vmem:[#allocation3 + $0x8] sm:$0xf]
      %s1930 = scalar_lea.vmem %s4, 32
      %v1931 = vld [vmem:[%s1930] sm:$0xf]
      %v1934 = vcombine.high %v1928, %v1928
      %1935 = vrot.lane.b32.xlu0 %v1928, 94
      %v1936 = vpop.permute.xlu0 %1935
      %1937 = vrot.lane.b32.xlu0 %v1934, 94
      %v1938 = vpop.permute.xlu0 %1937
      %1939 = vrot.lane.b32.xlu0 %v1929, 94
      %v1940 = vpop.permute.xlu0 %1939
      %v1941 = vsel %vm1080, %v1936, %v1938
      %v1942 = vsel %vm1080, %v1938, %v1940
      %v1944 = vsel %vm351, %v1931, 0
      %v1946 = vsel %vm355, %v1941, 0
      %v1948 = vsel %vm355, %v1942, 0
      %1950 = vmatprep.subr.mxu0 0.0
      %1951 = vmatpush1.msra.mxu0 0.0
      %1952 = vmatprep.subr.mxu0 0.0
      %1953 = vmatpush1.msra.mxu0 0.0
      %1954 = vmatprep.subr.mxu0 0.0
      %1955 = vmatpush1.msra.mxu0 0.0
      %1956 = vmatprep.subr.mxu0 0.0
      %1957 = vmatpush1.msra.mxu0 0.0
      %1958 = vmatprep.subr.mxu0 0.0
      %1959 = vmatpush1.msra.mxu0 0.0
      %1960 = vmatprep.subr.mxu0 0.0
      %1961 = vmatpush1.msra.mxu0 0.0
      %1962 = vmatprep.subr.mxu0 0.0
      %1963 = vmatpush1.msra.mxu0 0.0
      %1964 = vmatprep.subr.mxu0 0.0
      %1965 = vmatpush1.msra.mxu0 0.0
      %1966 = vmatprep.subr.mxu0 0.0
      %1967 = vmatpush1.msra.mxu0 0.0
      %1968 = vmatprep.subr.mxu0 0.0
      %1969 = vmatpush1.msra.mxu0 0.0
      %1970 = vmatprep.subr.mxu0 0.0
      %1971 = vmatpush1.msra.mxu0 0.0
      %1972 = vmatprep.subr.mxu0 0.0
      %1973 = vmatpush1.msra.mxu0 0.0
      %1974 = vmatprep.subr.mxu0 0.0
      %1975 = vmatpush1.msra.mxu0 0.0
      %1976 = vmatprep.subr.mxu0 0.0
      %1977 = vmatpush1.msra.mxu0 0.0
      %1978 = vmatprep.subr.mxu0 0.0
      %1979 = vmatpush1.msra.mxu0 0.0
      %1980 = vmatprep.subr.mxu0 %v1948
      %1981 = vmatpush1.msra.mxu0 %v1946
      %1982 = vmatprep.subr.mxu0 0.0
      %1983 = vmatpush2.msra.mxu0 0.0
      %1984 = vmatprep.subr.mxu0 0.0
      %1985 = vmatpush2.msra.mxu0 0.0
      %1986 = vmatprep.subr.mxu0 0.0
      %1987 = vmatpush2.msra.mxu0 0.0
      %1988 = vmatprep.subr.mxu0 0.0
      %1989 = vmatpush2.msra.mxu0 0.0
      %1990 = vmatprep.subr.mxu0 0.0
      %1991 = vmatpush2.msra.mxu0 0.0
      %1992 = vmatprep.subr.mxu0 0.0
      %1993 = vmatpush2.msra.mxu0 0.0
      %1994 = vmatprep.subr.mxu0 0.0
      %1995 = vmatpush2.msra.mxu0 0.0
      %1996 = vmatprep.subr.mxu0 0.0
      %1997 = vmatpush2.msra.mxu0 0.0
      %1998 = vmatprep.subr.mxu0 0.0
      %1999 = vmatpush2.msra.mxu0 0.0
      %2000 = vmatprep.subr.mxu0 0.0
      %2001 = vmatpush2.msra.mxu0 0.0
      %2002 = vmatprep.subr.mxu0 0.0
      %2003 = vmatpush2.msra.mxu0 0.0
      %2004 = vmatprep.subr.mxu0 0.0
      %2005 = vmatpush2.msra.mxu0 0.0
      %2006 = vmatprep.subr.mxu0 0.0
      %2007 = vmatpush2.msra.mxu0 0.0
      %2008 = vmatprep.subr.mxu0 0.0
      %2009 = vmatpush2.msra.mxu0 0.0
      %2010 = vmatprep.subr.mxu0 0.0
      %2011 = vmatpush2.msra.mxu0 0.0
      %2012 = vmatprep.subr.mxu0 0.0
      %2013 = vmatpush2.msra.mxu0 0.0
      %2014 = vmatprep.mubr.f32.mxu0 0.0
      %2015 = vmatmul.mubr.f32.gmra.mxu0 %v1944
      %v2016 = vpop.f32.mrf.mxu0
      %v2017 = vadd.f32 0.0, %v2016
      %v2018 = vpop.f32.mrf.mxu0
      %v2019 = vadd.f32 0.0, %v2018
      %2020 = vdwg.mxu0
      %v2021 = vadd.f32 %v1924, %v2017
      %v2022 = vadd.f32 %v1926, %v2019
      %v2023 = vmul.f32 %v308, %v1469
      %v2024 = vmul.f32 %v309, %v1470
      %v2025 = vadd.f32 %v1745, %v2023
      %v2026 = vadd.f32 %v1746, %v2024
      %v2027 = vmul.f32 %v312, %v2021
      %v2028 = vmul.f32 %v313, %v2022
      %v2029 = vadd.f32 %v2025, %v2027
      %v2030 = vadd.f32 %v2026, %v2028
      %v2031 = vld [vmem:[%s5] sm:$0xf]
      %2033 = vset.pattern.permute.xlu0 0
      %2034 = vperm.xlu0 %2033, %v2031
      %v2035 = vpop.permute.xlu0 %2034
      %v2037 = vmul.f32 %v2029, %v2035
      %v2038 = vmul.f32 %v2030, %v2035
      %v2039 = vld [vmem:[%s6] sm:$0xf]
      %2041 = vset.pattern.permute.xlu0 0
      %2042 = vperm.xlu0 %2041, %v2039
      %v2043 = vpop.permute.xlu0 %2042
      %v2045 = vadd.f32 %v2037, %v2043
      %v2046 = vadd.f32 %v2038, %v2043
      %vm2047 = vcmp.ge.f32.partialorder %v2045, 0.0
      %vm2048 = vcmp.ge.f32.partialorder %v2046, 0.0
      %v2049 = vmul.f32 %v2045, 0.2
      %v2050 = vmul.f32 %v2046, 0.2
      %v2051 = vsel %vm2047, %v2045, %v2049
      %v2052 = vsel %vm2048, %v2046, %v2050
      %v2053 = vcombine.high %v320, %v320
      %v2055 = vadd.f32 %v2051, %v320
      %v2056 = vadd.f32 %v2052, %v2053
      %v2059 = vcombine.low %v2055, %v2056
      %2061 = vst [vmem:[%s278] sm:$0xff] %v2059
      %p2062 = scmp.lt.s32.totalorder %s18, 1
      %s2063 = scalar_select %p2062, %s18, 1
      %s2064 = smul.addr %s2063, 2
      %s2065 = smul.addr %s2064, 4
      %s2066 = scalar_lea.vmem %s7, %s2065
      // Predicated region
      $region49: #{resblock_forward.1} parent=47 // pred_check
        %p2067 = pneg %p188
      $region50: #{resblock_forward.1} parent=47 // pred_check_branch
        %2069 = sbr.rel (%p2067) target = $region52
      $region51: #{resblock_forward.1} parent=47 // pred_region
        _
      $region52: #{resblock_forward.1} parent=47 // pred_fallthru
        _
    $region48: #{resblock_forward.1} parent=5 // pred_fallthru
      _
    %p2070 = scmp.le.s32.totalorder 2, %s13
    // Predicated region
    $region53: #{resblock_forward.1} parent=5 // pred_check
      %p2071 = pneg %p2070
    $region54: #{resblock_forward.1} parent=5 // pred_check_branch
      %2073 = sbr.rel (%p2071) target = $region56
    $region55: #{resblock_forward.1} parent=5 // pred_region
      %s2074 = ssub.s32 %s13, 2
      // Predicated region
      $region57: #{resblock_forward.1} parent=55 // pred_check
        %p2075 = pneg %p194
      $region58: #{resblock_forward.1} parent=55 // pred_check_branch
        %2077 = sbr.rel (%p2075) target = $region60
      $region59: #{resblock_forward.1} parent=55 // pred_region
        %p2078 = scmp.lt.s32.totalorder %s19, 1
        %s2079 = scalar_select %p2078, %s19, 1
        %s2080 = smul.addr %s2079, 2
        %s2081 = smul.addr %s2080, 4
        %s2082 = scalar_lea.vmem %s7, %s2081
      $region60: #{resblock_forward.1} parent=55 // pred_fallthru
        _
    $region56: #{resblock_forward.1} parent=5 // pred_fallthru
      _
  $region6: #{resblock_forward.1} parent=0 // loop_footer
    %s17 = sadd.s32 1, %s13
  $region7: #{resblock_forward.1} parent=0 // loop_footer_branch
    %12 = sbr.rel target = $region3
  $region8: #{resblock_forward.1} parent=0 // loop_exit
    _

</llo_original>
